<compile_context>
chip_gen: v5e
topology: v5e:2x2
jax: 0.10.0
libtpu: 0.0.40
codegen_flags: <defaults>
</compile_context>

<pallas_src>
import functools

import jax
import jax.numpy as jnp
from jax import lax
from jax.experimental import pallas as pl
from jax.experimental.pallas import tpu as pltpu


def _softmax_lastdim(s):
    s = s - jnp.max(s, axis=-1, keepdims=True)
    e = jnp.exp(s)
    return e * pl.reciprocal(jnp.sum(e, axis=-1, keepdims=True), approx=True)


def sam_kernel(h_ref, m_ref,
               w_hp_ref, b_hp_ref,            # fused h-side projection  (C, 2*hid+C)
               w_mp_ref, b_mp_ref,            # fused m-side projection  (C, hid+C)
               w_zh_ref, w_zm_ref, b_z_ref,   # layer_z split by input   (C, 2C) x2, (1, 2C)
               w_gz_ref, w_gh_ref, b_g_ref,   # layer_m split in/out     (3,2C,C),(3,C,C),(3,1,C)
               new_h_ref, new_m_ref,
               *, hidden):
    f32 = jnp.float32
    bf16 = jnp.bfloat16

    h32 = h_ref[0]                       # (HW, C) f32
    m32 = m_ref[0]                       # (HW, C) f32 (kept f32 for the gate epilogue)
    h_b = h32.astype(bf16)
    m_b = m32.astype(bf16)

    # Fused per-pixel projections (1x1 convs) -> two wide MXU launches.
    proj_h = jnp.dot(h_b, w_hp_ref[...], preferred_element_type=f32) + b_hp_ref[...]
    proj_m = jnp.dot(m_b, w_mp_ref[...], preferred_element_type=f32) + b_mp_ref[...]

    q  = proj_h[:, :hidden].astype(bf16)             # (HW, hid)
    k  = proj_h[:, hidden:2 * hidden].astype(bf16)   # (HW, hid)
    v  = proj_h[:, 2 * hidden:].astype(bf16)         # (HW, C)
    k2 = proj_m[:, :hidden].astype(bf16)             # (HW, hid)
    v2 = proj_m[:, hidden:].astype(bf16)             # (HW, C)

    # Attention over pixels; contract last axes directly (no in-kernel transpose).
    dn = (((1,), (1,)), ((), ()))
    a_h = _softmax_lastdim(lax.dot_general(q, k,  dn, preferred_element_type=f32))  # (HW, HW)
    a_m = _softmax_lastdim(lax.dot_general(q, k2, dn, preferred_element_type=f32))  # (HW, HW)
    # TODO(synk): flash-style tiling over key pixels for large HW (v7x has 64 MiB VMEM).

    z_h = jnp.dot(a_h.astype(bf16), v,  preferred_element_type=f32)  # (HW, C)
    z_m = jnp.dot(a_m.astype(bf16), v2, preferred_element_type=f32)  # (HW, C)

    # layer_z without concatenation: [z_h | z_m] @ Wz^T == z_h @ Wza + z_m @ Wzb.
    z = (jnp.dot(z_h.astype(bf16), w_zh_ref[...], preferred_element_type=f32)
         + jnp.dot(z_m.astype(bf16), w_zm_ref[...], preferred_element_type=f32)
         + b_z_ref[...])                                              # (HW, 2C)
    z_b = z.astype(bf16)

    # layer_m without concatenation / 32-lane output slicing: gates emitted separately.
    def gate_pre(j):
        return (jnp.dot(z_b, w_gz_ref[j], preferred_element_type=f32)
                + jnp.dot(h_b, w_gh_ref[j], preferred_element_type=f32)
                + b_g_ref[j])                                         # (HW, C)

    mo = gate_pre(0)
    mg = gate_pre(1)
    mi = jax.nn.sigmoid(gate_pre(2))

    new_m = (1.0 - mi) * m32 + mi * jnp.tanh(mg)
    new_h = jax.nn.sigmoid(mo) * new_m

    new_h_ref[0] = new_h.astype(new_h_ref.dtype)
    new_m_ref[0] = new_m.astype(new_m_ref.dtype)


def _pack_weights(params, C):
    """Trace-time weight restructuring: transpose, fuse, split, bf16 cast. All free in XLA."""
    bf16 = jnp.bfloat16
    f32 = jnp.float32

    # Fused h-side projection: columns ordered [q | k | v].
    w_hp = jnp.concatenate(
        [params["wq"].T, params["wk"].T, params["wv"].T], axis=1).astype(bf16)   # (C, 2*hid+C)
    b_hp = jnp.concatenate(
        [params["bq"], params["bk"], params["bv"]])[None, :].astype(f32)

    # Fused m-side projection: columns ordered [k2 | v2].
    w_mp = jnp.concatenate(
        [params["wk2"].T, params["wv2"].T], axis=1).astype(bf16)                 # (C, hid+C)
    b_mp = jnp.concatenate([params["bk2"], params["bv2"]])[None, :].astype(f32)

    # layer_z: input rows ordered [z_h (C) | z_m (C)].
    wzT = params["wz"].T                                                         # (2C, 2C)
    w_zh = wzT[:C, :].astype(bf16)
    w_zm = wzT[C:, :].astype(bf16)
    b_z = params["bz"][None, :].astype(f32)

    # layer_m: input rows ordered [z (2C) | h (C)], output cols ordered [mo | mg | mi].
    wmT = params["wm"].T                                                         # (3C, 3C)
    w_gz = jnp.stack(
        [wmT[:2 * C, j * C:(j + 1) * C] for j in range(3)], axis=0).astype(bf16)  # (3, 2C, C)
    w_gh = jnp.stack(
        [wmT[2 * C:, j * C:(j + 1) * C] for j in range(3)], axis=0).astype(bf16)  # (3, C, C)
    b_g = jnp.stack(
        [params["bm"][j * C:(j + 1) * C][None, :] for j in range(3)], axis=0).astype(f32)

    return (w_hp, b_hp, w_mp, b_mp, w_zh, w_zm, b_z, w_gz, w_gh, b_g)


def sam_forward_pixels(h_pix, m_pix, params):
    """Channels-last entry point. h_pix, m_pix: (B, HW, C) float32."""
    B, HW, C = h_pix.shape
    hidden = params["wq"].shape[0]
    flat = _pack_weights(params, C)

    def full_spec(a):
        return pl.BlockSpec(a.shape, lambda b: (0,) * a.ndim)   # constant -> DMA'd once

    in_specs = ([pl.BlockSpec((1, HW, C), lambda b: (b, 0, 0)),
                 pl.BlockSpec((1, HW, C), lambda b: (b, 0, 0))]
                + [full_spec(a) for a in flat])
    out_specs = [pl.BlockSpec((1, HW, C), lambda b: (b, 0, 0)),
                 pl.BlockSpec((1, HW, C), lambda b: (b, 0, 0))]

    kernel = functools.partial(sam_kernel, hidden=hidden)
    new_h, new_m = pl.pallas_call(
        kernel,
        grid_spec=pltpu.PrefetchScalarGridSpec(
            num_scalar_prefetch=0,
            grid=(B,),
            in_specs=in_specs,
            out_specs=out_specs,
        ),
        out_shape=(
            jax.ShapeDtypeStruct((B, HW, C), jnp.float32),
            jax.ShapeDtypeStruct((B, HW, C), jnp.float32),
        ),
        compiler_params=pltpu.CompilerParams(dimension_semantics=("parallel",)),
    )(h_pix, m_pix, *flat)
    return new_h, new_m


def sam_forward(h_nchw, m_nchw, params):
    """NCHW compatibility wrapper (matches the PyTorch module interface)."""
    B, C, H, W = h_nchw.shape
    h = jnp.transpose(h_nchw, (0, 2, 3, 1)).reshape(B, H * W, C)
    m = jnp.transpose(m_nchw, (0, 2, 3, 1)).reshape(B, H * W, C)
    new_h, new_m = sam_forward_pixels(h, m, params)
    new_h = new_h.reshape(B, H, W, C).transpose(0, 3, 1, 2)
    new_m = new_m.reshape(B, H, W, C).transpose(0, 3, 1, 2)
    return new_h, new_m


def sam_reference(h, m, params):
    """Pure-JAX f32 NCHW reference mirroring the PyTorch module exactly."""
    B, C, H, W = h.shape
    HW = H * W
    hidden = params["wq"].shape[0]

    def conv1x1(x, w, b):  # x: (B, Cin, H, W), w: (Cout, Cin), b: (Cout,)
        return jnp.einsum("oc,bchw->bohw", w, x) + b[None, :, None, None]

    K_h = conv1x1(h, params["wk"], params["bk"]).reshape(B, hidden, HW)
    Q_h = conv1x1(h, params["wq"], params["bq"]).reshape(B, hidden, HW)
    Q_h = jnp.transpose(Q_h, (0, 2, 1))
    A_h = jax.nn.softmax(jnp.einsum("bik,bkj->bij", Q_h, K_h), axis=-1)
    V_h = conv1x1(h, params["wv"], params["bv"]).reshape(B, C, HW)
    Z_h = jnp.einsum("bij,bcj->bic", A_h, V_h)

    K_m = conv1x1(m, params["wk2"], params["bk2"]).reshape(B, hidden, HW)
    V_m = conv1x1(m, params["wv2"], params["bv2"]).reshape(B, C, HW)
    A_m = jax.nn.softmax(jnp.einsum("bik,bkj->bij", Q_h, K_m), axis=-1)
    Z_m = jnp.einsum("bij,bcj->bic", A_m, V_m)

    Z_h = jnp.transpose(Z_h, (0, 2, 1)).reshape(B, C, H, W)
    Z_m = jnp.transpose(Z_m, (0, 2, 1)).reshape(B, C, H, W)
    W_z = jnp.concatenate([Z_h, Z_m], axis=1)
    Z = conv1x1(W_z, params["wz"], params["bz"])
    combined = conv1x1(jnp.concatenate([Z, h], axis=1), params["wm"], params["bm"])
    mo, mg, mi = jnp.split(combined, 3, axis=1)
    mi = jax.nn.sigmoid(mi)
    new_m = (1 - mi) * m + mi * jnp.tanh(mg)
    new_h = jax.nn.sigmoid(mo) * new_m
    return new_h, new_m


def make_params(key, input_dim, hidden_dim):
    ks = jax.random.split(key, 14)
    s = 0.1
    return {
        "wq":  s * jax.random.normal(ks[0], (hidden_dim, input_dim), jnp.float32),
        "bq":  s * jax.random.normal(ks[1], (hidden_dim,), jnp.float32),
        "wk":  s * jax.random.normal(ks[2], (hidden_dim, input_dim), jnp.float32),
        "bk":  s * jax.random.normal(ks[3], (hidden_dim,), jnp.float32),
        "wk2": s * jax.random.normal(ks[4], (hidden_dim, input_dim), jnp.float32),
        "bk2": s * jax.random.normal(ks[5], (hidden_dim,), jnp.float32),
        "wv":  s * jax.random.normal(ks[6], (input_dim, input_dim), jnp.float32),
        "bv":  s * jax.random.normal(ks[7], (input_dim,), jnp.float32),
        "wv2": s * jax.random.normal(ks[8], (input_dim, input_dim), jnp.float32),
        "bv2": s * jax.random.normal(ks[9], (input_dim,), jnp.float32),
        "wz":  s * jax.random.normal(ks[10], (2 * input_dim, 2 * input_dim), jnp.float32),
        "bz":  s * jax.random.normal(ks[11], (2 * input_dim,), jnp.float32),
        "wm":  s * jax.random.normal(ks[12], (3 * input_dim, 3 * input_dim), jnp.float32),
        "bm":  s * jax.random.normal(ks[13], (3 * input_dim,), jnp.float32),
    }


if __name__ == "__main__":
    B, C, H, W = 2, 32, 8, 8          # input_dim = 32, HW = 64
    hidden_dim = 32

    key = jax.random.PRNGKey(0)
    kh, km, kp = jax.random.split(key, 3)
    h = jax.random.normal(kh, (B, C, H, W), jnp.float32)
    m = jax.random.normal(km, (B, C, H, W), jnp.float32)
    params = make_params(kp, C, hidden_dim)

    new_h, new_m = sam_forward(h, m, params)
    jax.block_until_ready((new_h, new_m))

    ref_h, ref_m = sam_reference(h, m, params)
    # bf16 MXU operands (f32 accumulation) -> relaxed tolerance vs the f32 reference.
    assert jnp.allclose(new_h, ref_h, atol=5e-2, rtol=5e-2), "new_h mismatch"
    assert jnp.allclose(new_m, ref_m, atol=5e-2, rtol=5e-2), "new_m mismatch"

    print("KERNEL_OK")
</pallas_src>

<mosaic_0001>
module attributes {stable_mosaic.version = 11 : i64} {
  func.func @sam_kernel(%arg0: i32, %arg1: memref<1x64x32xf32, #tpu.memory_space<vmem>>, %arg2: memref<1x64x32xf32, #tpu.memory_space<vmem>>, %arg3: memref<32x96xbf16, #tpu.memory_space<vmem>>, %arg4: memref<1x96xf32, #tpu.memory_space<vmem>>, %arg5: memref<32x64xbf16, #tpu.memory_space<vmem>>, %arg6: memref<1x64xf32, #tpu.memory_space<vmem>>, %arg7: memref<32x64xbf16, #tpu.memory_space<vmem>>, %arg8: memref<32x64xbf16, #tpu.memory_space<vmem>>, %arg9: memref<1x64xf32, #tpu.memory_space<vmem>>, %arg10: memref<3x64x32xbf16, #tpu.memory_space<vmem>>, %arg11: memref<3x32x32xbf16, #tpu.memory_space<vmem>>, %arg12: memref<3x1x32xf32, #tpu.memory_space<vmem>>, %arg13: memref<1x64x32xf32, #tpu.memory_space<vmem>>, %arg14: memref<1x64x32xf32, #tpu.memory_space<vmem>>) attributes {dimension_semantics = [#tpu.dimension_semantics<parallel>], iteration_bounds = array<i64: 2>, scalar_prefetch = 0 : i64, scratch_operands = 0 : i64, tpu.core_type = #tpu.core_type<tc>, window_params = [{transform_indices = @transform_0, window_bounds = array<i64: 1, 64, 32>}, {transform_indices = @transform_1, window_bounds = array<i64: 1, 64, 32>}, {pipeline_mode = #tpu.pipeline_mode<synchronous>, transform_indices = @transform_2, window_bounds = array<i64: 32, 96>}, {pipeline_mode = #tpu.pipeline_mode<synchronous>, transform_indices = @transform_3, window_bounds = array<i64: 1, 96>}, {pipeline_mode = #tpu.pipeline_mode<synchronous>, transform_indices = @transform_4, window_bounds = array<i64: 32, 64>}, {pipeline_mode = #tpu.pipeline_mode<synchronous>, transform_indices = @transform_5, window_bounds = array<i64: 1, 64>}, {pipeline_mode = #tpu.pipeline_mode<synchronous>, transform_indices = @transform_6, window_bounds = array<i64: 32, 64>}, {pipeline_mode = #tpu.pipeline_mode<synchronous>, transform_indices = @transform_7, window_bounds = array<i64: 32, 64>}, {pipeline_mode = #tpu.pipeline_mode<synchronous>, transform_indices = @transform_8, window_bounds = array<i64: 1, 64>}, {pipeline_mode = #tpu.pipeline_mode<synchronous>, transform_indices = @transform_9, window_bounds = array<i64: 3, 64, 32>}, {pipeline_mode = #tpu.pipeline_mode<synchronous>, transform_indices = @transform_10, window_bounds = array<i64: 3, 32, 32>}, {pipeline_mode = #tpu.pipeline_mode<synchronous>, transform_indices = @transform_11, window_bounds = array<i64: 3, 1, 32>}, {transform_indices = @transform_12, window_bounds = array<i64: 1, 64, 32>}, {transform_indices = @transform_13, window_bounds = array<i64: 1, 64, 32>}]} {
    %c0 = arith.constant 0 : index
    %c0_0 = arith.constant 0 : index
    %c0_1 = arith.constant 0 : index
    %0 = vector.load %arg1[%c0, %c0_0, %c0_1] : memref<1x64x32xf32, #tpu.memory_space<vmem>>, vector<1x64x32xf32>
    %1 = vector.shape_cast %0 : vector<1x64x32xf32> to vector<64x32xf32>
    %c0_2 = arith.constant 0 : index
    %c0_3 = arith.constant 0 : index
    %c0_4 = arith.constant 0 : index
    %2 = vector.load %arg2[%c0_2, %c0_3, %c0_4] : memref<1x64x32xf32, #tpu.memory_space<vmem>>, vector<1x64x32xf32>
    %3 = vector.shape_cast %2 : vector<1x64x32xf32> to vector<64x32xf32>
    %4 = arith.truncf %1 : vector<64x32xf32> to vector<64x32xbf16>
    %5 = arith.truncf %3 : vector<64x32xf32> to vector<64x32xbf16>
    %c0_5 = arith.constant 0 : index
    %c0_6 = arith.constant 0 : index
    %6 = vector.load %arg3[%c0_5, %c0_6] : memref<32x96xbf16, #tpu.memory_space<vmem>>, vector<32x96xbf16>
    %cst = arith.constant dense<0.000000e+00> : vector<64x96xf32>
    %7 = tpu.matmul %4, %6, %cst {dimension_numbers = #tpu.dot_dimension_numbers<[1], [0], [0], [1], [0, 0, 1, 1], [], []>} : vector<64x32xbf16>, vector<32x96xbf16>, vector<64x96xf32> -> vector<64x96xf32>
    %c0_7 = arith.constant 0 : index
    %c0_8 = arith.constant 0 : index
    %8 = vector.load %arg4[%c0_7, %c0_8] : memref<1x96xf32, #tpu.memory_space<vmem>>, vector<1x96xf32>
    %9 = vector.broadcast %8 : vector<1x96xf32> to vector<64x96xf32>
    %10 = arith.addf %7, %9 : vector<64x96xf32>
    %c0_9 = arith.constant 0 : index
    %c0_10 = arith.constant 0 : index
    %11 = vector.load %arg5[%c0_9, %c0_10] : memref<32x64xbf16, #tpu.memory_space<vmem>>, vector<32x64xbf16>
    %cst_11 = arith.constant dense<0.000000e+00> : vector<64x64xf32>
    %12 = tpu.matmul %5, %11, %cst_11 {dimension_numbers = #tpu.dot_dimension_numbers<[1], [0], [0], [1], [0, 0, 1, 1], [], []>} : vector<64x32xbf16>, vector<32x64xbf16>, vector<64x64xf32> -> vector<64x64xf32>
    %c0_12 = arith.constant 0 : index
    %c0_13 = arith.constant 0 : index
    %13 = vector.load %arg6[%c0_12, %c0_13] : memref<1x64xf32, #tpu.memory_space<vmem>>, vector<1x64xf32>
    %14 = vector.broadcast %13 : vector<1x64xf32> to vector<64x64xf32>
    %15 = arith.addf %12, %14 : vector<64x64xf32>
    %16 = vector.extract_strided_slice %10 {offsets = [0, 0], sizes = [64, 32], strides = [1, 1]} : vector<64x96xf32> to vector<64x32xf32>
    %17 = arith.truncf %16 : vector<64x32xf32> to vector<64x32xbf16>
    %18 = vector.extract_strided_slice %10 {offsets = [0, 32], sizes = [64, 32], strides = [1, 1]} : vector<64x96xf32> to vector<64x32xf32>
    %19 = arith.truncf %18 : vector<64x32xf32> to vector<64x32xbf16>
    %20 = vector.extract_strided_slice %10 {offsets = [0, 64], sizes = [64, 32], strides = [1, 1]} : vector<64x96xf32> to vector<64x32xf32>
    %21 = arith.truncf %20 : vector<64x32xf32> to vector<64x32xbf16>
    %22 = vector.extract_strided_slice %15 {offsets = [0, 0], sizes = [64, 32], strides = [1, 1]} : vector<64x64xf32> to vector<64x32xf32>
    %23 = arith.truncf %22 : vector<64x32xf32> to vector<64x32xbf16>
    %24 = vector.extract_strided_slice %15 {offsets = [0, 32], sizes = [64, 32], strides = [1, 1]} : vector<64x64xf32> to vector<64x32xf32>
    %25 = arith.truncf %24 : vector<64x32xf32> to vector<64x32xbf16>
    %cst_14 = arith.constant dense<0.000000e+00> : vector<64x64xf32>
    %26 = tpu.matmul %17, %19, %cst_14 {dimension_numbers = #tpu.dot_dimension_numbers<[1], [1], [0], [0], [0, 0, 1, 0], [], []>} : vector<64x32xbf16>, vector<64x32xbf16>, vector<64x64xf32> -> vector<64x64xf32>
    %cst_15 = arith.constant dense<0xFF800000> : vector<64xf32>
    %27 = vector.multi_reduction <maximumf>, %26, %cst_15 [1] : vector<64x64xf32> to vector<64xf32>
    %28 = vector.shape_cast %27 : vector<64xf32> to vector<64x1xf32>
    %29 = vector.broadcast %28 : vector<64x1xf32> to vector<64x64xf32>
    %30 = arith.subf %26, %29 : vector<64x64xf32>
    %31 = math.exp %30 : vector<64x64xf32>
    %cst_16 = arith.constant dense<0.000000e+00> : vector<64xf32>
    %32 = vector.multi_reduction <add>, %31, %cst_16 [1] : vector<64x64xf32> to vector<64xf32>
    %33 = vector.shape_cast %32 : vector<64xf32> to vector<64x1xf32>
    %34 = tpu.reciprocal %33 {approx = true} : vector<64x1xf32> -> vector<64x1xf32>
    %35 = vector.broadcast %34 : vector<64x1xf32> to vector<64x64xf32>
    %36 = arith.mulf %31, %35 : vector<64x64xf32>
    %cst_17 = arith.constant dense<0.000000e+00> : vector<64x64xf32>
    %37 = tpu.matmul %17, %23, %cst_17 {dimension_numbers = #tpu.dot_dimension_numbers<[1], [1], [0], [0], [0, 0, 1, 0], [], []>} : vector<64x32xbf16>, vector<64x32xbf16>, vector<64x64xf32> -> vector<64x64xf32>
    %cst_18 = arith.constant dense<0xFF800000> : vector<64xf32>
    %38 = vector.multi_reduction <maximumf>, %37, %cst_18 [1] : vector<64x64xf32> to vector<64xf32>
    %39 = vector.shape_cast %38 : vector<64xf32> to vector<64x1xf32>
    %40 = vector.broadcast %39 : vector<64x1xf32> to vector<64x64xf32>
    %41 = arith.subf %37, %40 : vector<64x64xf32>
    %42 = math.exp %41 : vector<64x64xf32>
    %cst_19 = arith.constant dense<0.000000e+00> : vector<64xf32>
    %43 = vector.multi_reduction <add>, %42, %cst_19 [1] : vector<64x64xf32> to vector<64xf32>
    %44 = vector.shape_cast %43 : vector<64xf32> to vector<64x1xf32>
    %45 = tpu.reciprocal %44 {approx = true} : vector<64x1xf32> -> vector<64x1xf32>
    %46 = vector.broadcast %45 : vector<64x1xf32> to vector<64x64xf32>
    %47 = arith.mulf %42, %46 : vector<64x64xf32>
    %48 = arith.truncf %36 : vector<64x64xf32> to vector<64x64xbf16>
    %cst_20 = arith.constant dense<0.000000e+00> : vector<64x32xf32>
    %49 = tpu.matmul %48, %21, %cst_20 {dimension_numbers = #tpu.dot_dimension_numbers<[1], [0], [0], [1], [0, 0, 1, 1], [], []>} : vector<64x64xbf16>, vector<64x32xbf16>, vector<64x32xf32> -> vector<64x32xf32>
    %50 = arith.truncf %47 : vector<64x64xf32> to vector<64x64xbf16>
    %cst_21 = arith.constant dense<0.000000e+00> : vector<64x32xf32>
    %51 = tpu.matmul %50, %25, %cst_21 {dimension_numbers = #tpu.dot_dimension_numbers<[1], [0], [0], [1], [0, 0, 1, 1], [], []>} : vector<64x64xbf16>, vector<64x32xbf16>, vector<64x32xf32> -> vector<64x32xf32>
    %52 = arith.truncf %49 : vector<64x32xf32> to vector<64x32xbf16>
    %c0_22 = arith.constant 0 : index
    %c0_23 = arith.constant 0 : index
    %53 = vector.load %arg7[%c0_22, %c0_23] : memref<32x64xbf16, #tpu.memory_space<vmem>>, vector<32x64xbf16>
    %cst_24 = arith.constant dense<0.000000e+00> : vector<64x64xf32>
    %54 = tpu.matmul %52, %53, %cst_24 {dimension_numbers = #tpu.dot_dimension_numbers<[1], [0], [0], [1], [0, 0, 1, 1], [], []>} : vector<64x32xbf16>, vector<32x64xbf16>, vector<64x64xf32> -> vector<64x64xf32>
    %55 = arith.truncf %51 : vector<64x32xf32> to vector<64x32xbf16>
    %c0_25 = arith.constant 0 : index
    %c0_26 = arith.constant 0 : index
    %56 = vector.load %arg8[%c0_25, %c0_26] : memref<32x64xbf16, #tpu.memory_space<vmem>>, vector<32x64xbf16>
    %cst_27 = arith.constant dense<0.000000e+00> : vector<64x64xf32>
    %57 = tpu.matmul %55, %56, %cst_27 {dimension_numbers = #tpu.dot_dimension_numbers<[1], [0], [0], [1], [0, 0, 1, 1], [], []>} : vector<64x32xbf16>, vector<32x64xbf16>, vector<64x64xf32> -> vector<64x64xf32>
    %58 = arith.addf %54, %57 : vector<64x64xf32>
    %c0_28 = arith.constant 0 : index
    %c0_29 = arith.constant 0 : index
    %59 = vector.load %arg9[%c0_28, %c0_29] : memref<1x64xf32, #tpu.memory_space<vmem>>, vector<1x64xf32>
    %60 = vector.broadcast %59 : vector<1x64xf32> to vector<64x64xf32>
    %61 = arith.addf %58, %60 : vector<64x64xf32>
    %62 = arith.truncf %61 : vector<64x64xf32> to vector<64x64xbf16>
    %c0_30 = arith.constant 0 : index
    %c0_31 = arith.constant 0 : index
    %c0_32 = arith.constant 0 : index
    %63 = vector.load %arg10[%c0_30, %c0_31, %c0_32] : memref<3x64x32xbf16, #tpu.memory_space<vmem>>, vector<1x64x32xbf16>
    %64 = vector.shape_cast %63 : vector<1x64x32xbf16> to vector<64x32xbf16>
    %cst_33 = arith.constant dense<0.000000e+00> : vector<64x32xf32>
    %65 = tpu.matmul %62, %64, %cst_33 {dimension_numbers = #tpu.dot_dimension_numbers<[1], [0], [0], [1], [0, 0, 1, 1], [], []>} : vector<64x64xbf16>, vector<64x32xbf16>, vector<64x32xf32> -> vector<64x32xf32>
    %c0_34 = arith.constant 0 : index
    %c0_35 = arith.constant 0 : index
    %c0_36 = arith.constant 0 : index
    %66 = vector.load %arg11[%c0_34, %c0_35, %c0_36] : memref<3x32x32xbf16, #tpu.memory_space<vmem>>, vector<1x32x32xbf16>
    %67 = vector.shape_cast %66 : vector<1x32x32xbf16> to vector<32x32xbf16>
    %cst_37 = arith.constant dense<0.000000e+00> : vector<64x32xf32>
    %68 = tpu.matmul %4, %67, %cst_37 {dimension_numbers = #tpu.dot_dimension_numbers<[1], [0], [0], [1], [0, 0, 1, 1], [], []>} : vector<64x32xbf16>, vector<32x32xbf16>, vector<64x32xf32> -> vector<64x32xf32>
    %69 = arith.addf %65, %68 : vector<64x32xf32>
    %c0_38 = arith.constant 0 : index
    %c0_39 = arith.constant 0 : index
    %c0_40 = arith.constant 0 : index
    %70 = vector.load %arg12[%c0_38, %c0_39, %c0_40] : memref<3x1x32xf32, #tpu.memory_space<vmem>>, vector<1x1x32xf32>
    %71 = vector.shape_cast %70 : vector<1x1x32xf32> to vector<1x32xf32>
    %72 = vector.broadcast %71 : vector<1x32xf32> to vector<64x32xf32>
    %73 = arith.addf %69, %72 : vector<64x32xf32>
    %c1 = arith.constant 1 : index
    %c0_41 = arith.constant 0 : index
    %c0_42 = arith.constant 0 : index
    %74 = vector.load %arg10[%c1, %c0_41, %c0_42] : memref<3x64x32xbf16, #tpu.memory_space<vmem>>, vector<1x64x32xbf16>
    %75 = vector.shape_cast %74 : vector<1x64x32xbf16> to vector<64x32xbf16>
    %cst_43 = arith.constant dense<0.000000e+00> : vector<64x32xf32>
    %76 = tpu.matmul %62, %75, %cst_43 {dimension_numbers = #tpu.dot_dimension_numbers<[1], [0], [0], [1], [0, 0, 1, 1], [], []>} : vector<64x64xbf16>, vector<64x32xbf16>, vector<64x32xf32> -> vector<64x32xf32>
    %c1_44 = arith.constant 1 : index
    %c0_45 = arith.constant 0 : index
    %c0_46 = arith.constant 0 : index
    %77 = vector.load %arg11[%c1_44, %c0_45, %c0_46] : memref<3x32x32xbf16, #tpu.memory_space<vmem>>, vector<1x32x32xbf16>
    %78 = vector.shape_cast %77 : vector<1x32x32xbf16> to vector<32x32xbf16>
    %cst_47 = arith.constant dense<0.000000e+00> : vector<64x32xf32>
    %79 = tpu.matmul %4, %78, %cst_47 {dimension_numbers = #tpu.dot_dimension_numbers<[1], [0], [0], [1], [0, 0, 1, 1], [], []>} : vector<64x32xbf16>, vector<32x32xbf16>, vector<64x32xf32> -> vector<64x32xf32>
    %80 = arith.addf %76, %79 : vector<64x32xf32>
    %c1_48 = arith.constant 1 : index
    %c0_49 = arith.constant 0 : index
    %c0_50 = arith.constant 0 : index
    %81 = vector.load %arg12[%c1_48, %c0_49, %c0_50] : memref<3x1x32xf32, #tpu.memory_space<vmem>>, vector<1x1x32xf32>
    %82 = vector.shape_cast %81 : vector<1x1x32xf32> to vector<1x32xf32>
    %83 = vector.broadcast %82 : vector<1x32xf32> to vector<64x32xf32>
    %84 = arith.addf %80, %83 : vector<64x32xf32>
    %c2 = arith.constant 2 : index
    %c0_51 = arith.constant 0 : index
    %c0_52 = arith.constant 0 : index
    %85 = vector.load %arg10[%c2, %c0_51, %c0_52] : memref<3x64x32xbf16, #tpu.memory_space<vmem>>, vector<1x64x32xbf16>
    %86 = vector.shape_cast %85 : vector<1x64x32xbf16> to vector<64x32xbf16>
    %cst_53 = arith.constant dense<0.000000e+00> : vector<64x32xf32>
    %87 = tpu.matmul %62, %86, %cst_53 {dimension_numbers = #tpu.dot_dimension_numbers<[1], [0], [0], [1], [0, 0, 1, 1], [], []>} : vector<64x64xbf16>, vector<64x32xbf16>, vector<64x32xf32> -> vector<64x32xf32>
    %c2_54 = arith.constant 2 : index
    %c0_55 = arith.constant 0 : index
    %c0_56 = arith.constant 0 : index
    %88 = vector.load %arg11[%c2_54, %c0_55, %c0_56] : memref<3x32x32xbf16, #tpu.memory_space<vmem>>, vector<1x32x32xbf16>
    %89 = vector.shape_cast %88 : vector<1x32x32xbf16> to vector<32x32xbf16>
    %cst_57 = arith.constant dense<0.000000e+00> : vector<64x32xf32>
    %90 = tpu.matmul %4, %89, %cst_57 {dimension_numbers = #tpu.dot_dimension_numbers<[1], [0], [0], [1], [0, 0, 1, 1], [], []>} : vector<64x32xbf16>, vector<32x32xbf16>, vector<64x32xf32> -> vector<64x32xf32>
    %91 = arith.addf %87, %90 : vector<64x32xf32>
    %c2_58 = arith.constant 2 : index
    %c0_59 = arith.constant 0 : index
    %c0_60 = arith.constant 0 : index
    %92 = vector.load %arg12[%c2_58, %c0_59, %c0_60] : memref<3x1x32xf32, #tpu.memory_space<vmem>>, vector<1x1x32xf32>
    %93 = vector.shape_cast %92 : vector<1x1x32xf32> to vector<1x32xf32>
    %94 = vector.broadcast %93 : vector<1x32xf32> to vector<64x32xf32>
    %95 = arith.addf %91, %94 : vector<64x32xf32>
    %96 = arith.negf %95 : vector<64x32xf32>
    %97 = math.exp %96 : vector<64x32xf32>
    %cst_61 = arith.constant 1.000000e+00 : f32
    %98 = vector.broadcast %cst_61 : f32 to vector<64x32xf32>
    %99 = arith.addf %98, %97 : vector<64x32xf32>
    %100 = arith.divf %98, %99 : vector<64x32xf32>
    %cst_62 = arith.constant 1.000000e+00 : f32
    %101 = vector.broadcast %cst_62 : f32 to vector<64x32xf32>
    %102 = arith.subf %101, %100 : vector<64x32xf32>
    %103 = arith.mulf %102, %3 : vector<64x32xf32>
    %104 = math.tanh %84 : vector<64x32xf32>
    %105 = arith.mulf %100, %104 : vector<64x32xf32>
    %106 = arith.addf %103, %105 : vector<64x32xf32>
    %107 = arith.negf %73 : vector<64x32xf32>
    %108 = math.exp %107 : vector<64x32xf32>
    %cst_63 = arith.constant 1.000000e+00 : f32
    %109 = vector.broadcast %cst_63 : f32 to vector<64x32xf32>
    %110 = arith.addf %109, %108 : vector<64x32xf32>
    %111 = arith.divf %109, %110 : vector<64x32xf32>
    %112 = arith.mulf %111, %106 : vector<64x32xf32>
    %c0_64 = arith.constant 0 : index
    %c0_65 = arith.constant 0 : index
    %c0_66 = arith.constant 0 : index
    %113 = vector.load %arg13[%c0_64, %c0_65, %c0_66] : memref<1x64x32xf32, #tpu.memory_space<vmem>>, vector<1x64x32xf32>
    %114 = vector.shape_cast %113 : vector<1x64x32xf32> to vector<64x32xf32>
    %115 = vector.shape_cast %112 : vector<64x32xf32> to vector<1x64x32xf32>
    tpu.vector_store %arg13[%c0_64, %c0_65, %c0_66], %115 {strides = array<i32>} : memref<1x64x32xf32, #tpu.memory_space<vmem>>, vector<1x64x32xf32>,
    %c0_67 = arith.constant 0 : index
    %c0_68 = arith.constant 0 : index
    %c0_69 = arith.constant 0 : index
    %116 = vector.load %arg14[%c0_67, %c0_68, %c0_69] : memref<1x64x32xf32, #tpu.memory_space<vmem>>, vector<1x64x32xf32>
    %117 = vector.shape_cast %116 : vector<1x64x32xf32> to vector<64x32xf32>
    %118 = vector.shape_cast %106 : vector<64x32xf32> to vector<1x64x32xf32>
    tpu.vector_store %arg14[%c0_67, %c0_68, %c0_69], %118 {strides = array<i32>} : memref<1x64x32xf32, #tpu.memory_space<vmem>>, vector<1x64x32xf32>,
    return
  }
  func.func @transform_0(%arg0: i32) -> (i32, i32, i32) {
    %c0_i32 = arith.constant 0 : i32
    %c0_i32_0 = arith.constant 0 : i32
    %c0_i32_1 = arith.constant 0 : i32
    return %arg0, %c0_i32, %c0_i32_0 : i32, i32, i32
  }
  func.func @transform_1(%arg0: i32) -> (i32, i32, i32) {
    %c0_i32 = arith.constant 0 : i32
    %c0_i32_0 = arith.constant 0 : i32
    %c0_i32_1 = arith.constant 0 : i32
    return %arg0, %c0_i32, %c0_i32_0 : i32, i32, i32
  }
  func.func @transform_2(%arg0: i32) -> (i32, i32) {
    %c0_i32 = arith.constant 0 : i32
    %c0_i32_0 = arith.constant 0 : i32
    %c0_i32_1 = arith.constant 0 : i32
    return %c0_i32, %c0_i32_0 : i32, i32
  }
  func.func @transform_3(%arg0: i32) -> (i32, i32) {
    %c0_i32 = arith.constant 0 : i32
    %c0_i32_0 = arith.constant 0 : i32
    %c0_i32_1 = arith.constant 0 : i32
    return %c0_i32, %c0_i32_0 : i32, i32
  }
  func.func @transform_4(%arg0: i32) -> (i32, i32) {
    %c0_i32 = arith.constant 0 : i32
    %c0_i32_0 = arith.constant 0 : i32
    %c0_i32_1 = arith.constant 0 : i32
    return %c0_i32, %c0_i32_0 : i32, i32
  }
  func.func @transform_5(%arg0: i32) -> (i32, i32) {
    %c0_i32 = arith.constant 0 : i32
    %c0_i32_0 = arith.constant 0 : i32
    %c0_i32_1 = arith.constant 0 : i32
    return %c0_i32, %c0_i32_0 : i32, i32
  }
  func.func @transform_6(%arg0: i32) -> (i32, i32) {
    %c0_i32 = arith.constant 0 : i32
    %c0_i32_0 = arith.constant 0 : i32
    %c0_i32_1 = arith.constant 0 : i32
    return %c0_i32, %c0_i32_0 : i32, i32
  }
  func.func @transform_7(%arg0: i32) -> (i32, i32) {
    %c0_i32 = arith.constant 0 : i32
    %c0_i32_0 = arith.constant 0 : i32
    %c0_i32_1 = arith.constant 0 : i32
    return %c0_i32, %c0_i32_0 : i32, i32
  }
  func.func @transform_8(%arg0: i32) -> (i32, i32) {
    %c0_i32 = arith.constant 0 : i32
    %c0_i32_0 = arith.constant 0 : i32
    %c0_i32_1 = arith.constant 0 : i32
    return %c0_i32, %c0_i32_0 : i32, i32
  }
  func.func @transform_9(%arg0: i32) -> (i32, i32, i32) {
    %c0_i32 = arith.constant 0 : i32
    %c0_i32_0 = arith.constant 0 : i32
    %c0_i32_1 = arith.constant 0 : i32
    %c0_i32_2 = arith.constant 0 : i32
    return %c0_i32, %c0_i32_0, %c0_i32_1 : i32, i32, i32
  }
  func.func @transform_10(%arg0: i32) -> (i32, i32, i32) {
    %c0_i32 = arith.constant 0 : i32
    %c0_i32_0 = arith.constant 0 : i32
    %c0_i32_1 = arith.constant 0 : i32
    %c0_i32_2 = arith.constant 0 : i32
    return %c0_i32, %c0_i32_0, %c0_i32_1 : i32, i32, i32
  }
  func.func @transform_11(%arg0: i32) -> (i32, i32, i32) {
    %c0_i32 = arith.constant 0 : i32
    %c0_i32_0 = arith.constant 0 : i32
    %c0_i32_1 = arith.constant 0 : i32
    %c0_i32_2 = arith.constant 0 : i32
    return %c0_i32, %c0_i32_0, %c0_i32_1 : i32, i32, i32
  }
  func.func @transform_12(%arg0: i32) -> (i32, i32, i32) {
    %c0_i32 = arith.constant 0 : i32
    %c0_i32_0 = arith.constant 0 : i32
    %c0_i32_1 = arith.constant 0 : i32
    return %arg0, %c0_i32, %c0_i32_0 : i32, i32, i32
  }
  func.func @transform_13(%arg0: i32) -> (i32, i32, i32) {
    %c0_i32 = arith.constant 0 : i32
    %c0_i32_0 = arith.constant 0 : i32
    %c0_i32_1 = arith.constant 0 : i32
    return %arg0, %c0_i32, %c0_i32_0 : i32, i32, i32
  }
}

</mosaic_0001>

<llo_original>
// kernel: tpu_custom_call.1
$region0: #{tpu_custom_call.1}
  #allocation0 [shape = 'u32[]', space=smem, size = 0x4, offset = 0x4, fixed_abs, tag = 'smem constant byte address 0x4 - core index']
  #allocation1 [shape = 'u32[72,128]{1,0:T(1,128)}', space=vmem, size = 0x9000, scoped, tag = 'internal scratch']
  %s0 = inlined_call_operand.vmem [shape: f32[2,64,32], index: 0, kind: input, shape index: {}]
  %s1 = inlined_call_operand.vmem [shape: f32[2,64,32], index: 1, kind: input, shape index: {}]
  %s2 = inlined_call_operand.vmem [shape: bf16[32,96], index: 2, kind: input, shape index: {}]
  %s3 = inlined_call_operand.vmem [shape: f32[1,96], index: 3, kind: input, shape index: {}]
  %s4 = inlined_call_operand.vmem [shape: bf16[32,64], index: 4, kind: input, shape index: {}]
  %s5 = inlined_call_operand.vmem [shape: f32[1,64], index: 5, kind: input, shape index: {}]
  %s6 = inlined_call_operand.vmem [shape: bf16[32,64], index: 6, kind: input, shape index: {}]
  %s7 = inlined_call_operand.vmem [shape: bf16[32,64], index: 7, kind: input, shape index: {}]
  %s8 = inlined_call_operand.vmem [shape: f32[1,64], index: 8, kind: input, shape index: {}]
  %s9 = inlined_call_operand.vmem [shape: bf16[3,64,32], index: 9, kind: input, shape index: {}]
  %s10 = inlined_call_operand.vmem [shape: bf16[3,32,32], index: 10, kind: input, shape index: {}]
  %s11 = inlined_call_operand.vmem [shape: f32[3,1,32], index: 11, kind: input, shape index: {}]
  %s12 = inlined_call_operand.vmem [shape: f32[2,64,32], index: 12, kind: output, shape index: {0}]
  %s13 = inlined_call_operand.vmem [shape: f32[2,64,32], index: 13, kind: output, shape index: {1}]
  %14 = xla_tuple %s12, %s13
  %s15 = sld [smem:[#allocation0]]
  $region89: #{tpu_custom_call.1} parent=0
    _
  %s17 = ssub.s32 1, %s15
  %s18 = scalar_select 0, %s17, %s15
  loop: start=0, step=1, limit=4
  $region2: #{tpu_custom_call.1} parent=0 // loop_pre_header
    _
  $region3: #{tpu_custom_call.1} parent=0 // loop_header
    %s20 = sphi 0, %s24
    %p21 = scmp.ge.s32.totalorder %s20, 4
    %s30 = sphi 0, %s32
    %s33 = sphi 0, %s30
    %s34 = sphi 0, %s33
    %s50 = sphi 0, %s34
    %s56 = sphi 0, %s58
    %s59 = sphi 0, %s56
    %s60 = sphi 0, %s59
    %s76 = sphi 0, %s60
    %s80 = sphi 0, %s80
    %s82 = sphi 0, %s80
    %s83 = sphi 0, %s82
    %s97 = sphi 0, %s83
    %s101 = sphi 0, %s101
    %s103 = sphi 0, %s101
    %s104 = sphi 0, %s103
    %s118 = sphi 0, %s104
    %s122 = sphi 0, %s122
    %s124 = sphi 0, %s122
    %s125 = sphi 0, %s124
    %s139 = sphi 0, %s125
    %s143 = sphi 0, %s143
    %s145 = sphi 0, %s143
    %s146 = sphi 0, %s145
    %s160 = sphi 0, %s146
    %s164 = sphi 0, %s164
    %s166 = sphi 0, %s164
    %s167 = sphi 0, %s166
    %s181 = sphi 0, %s167
    %s185 = sphi 0, %s185
    %s187 = sphi 0, %s185
    %s188 = sphi 0, %s187
    %s202 = sphi 0, %s188
    %s206 = sphi 0, %s206
    %s208 = sphi 0, %s206
    %s209 = sphi 0, %s208
    %s223 = sphi 0, %s209
    %s227 = sphi 0, %s227
    %s229 = sphi 0, %s227
    %s230 = sphi 0, %s229
    %s244 = sphi 0, %s230
    %s248 = sphi 0, %s248
    %s250 = sphi 0, %s248
    %s251 = sphi 0, %s250
    %s265 = sphi 0, %s251
    %s269 = sphi 0, %s269
    %s271 = sphi 0, %s269
    %s272 = sphi 0, %s271
    %s286 = sphi 0, %s272
    %s292 = sphi 0, %s294
    %s295 = sphi 0, %s292
    %s296 = sphi 0, %s295
    %s312 = sphi 0, %s296
    %s318 = sphi 0, %s320
    %s321 = sphi 0, %s318
    %s322 = sphi 0, %s321
    %s338 = sphi 0, %s322
  $region4: #{tpu_custom_call.1} parent=0 // loop_header_branch
    %23 = sbr.rel (%p21) target = $region8
  $region5: #{tpu_custom_call.1} parent=0 // loop_body
    %s25 = ssub.s32 %s20, 1
    %s26 = ssub.s32 %s20, 2
    %s27 = sadd.s32 %s20, 1
    %s28 = ssub.s32 %s20, %s27
    %p29 = scmp.eq.s32.totalorder %s28, 0
    %s31 = sadd.s32 %s30, 1
    %s32 = scalar_select %p29, %s30, %s31
    %p35 = pneg %p29
    %p36 = scmp.eq.s32.totalorder %s20, 1
    %p37 = por %p35, %p36
    %p38 = scmp.ne.s32.totalorder %s30, %s33
    %p39 = scmp.eq.s32.totalorder %s20, 0
    %p40 = por %p38, %p39
    %p41 = scmp.ne.s32.totalorder %s30, %s33
    %p42 = scmp.eq.s32.totalorder %s25, 1
    %p43 = por %p41, %p42
    %p44 = scmp.ne.s32.totalorder %s33, %s34
    %p45 = scmp.eq.s32.totalorder %s25, 0
    %p46 = por %p44, %p45
    %p47 = scmp.ne.s32.totalorder %s33, %s34
    %p48 = scmp.eq.s32.totalorder %s26, 1
    %p49 = por %p47, %p48
    %p51 = scmp.ne.s32.totalorder %s34, %s50
    %p52 = scmp.eq.s32.totalorder %s26, 0
    %p53 = por %p51, %p52
    %s54 = ssub.s32 %s20, %s27
    %p55 = scmp.eq.s32.totalorder %s54, 0
    %s57 = sadd.s32 %s56, 1
    %s58 = scalar_select %p55, %s56, %s57
    %p61 = pneg %p55
    %p62 = scmp.eq.s32.totalorder %s20, 1
    %p63 = por %p61, %p62
    %p64 = scmp.ne.s32.totalorder %s56, %s59
    %p65 = scmp.eq.s32.totalorder %s20, 0
    %p66 = por %p64, %p65
    %p67 = scmp.ne.s32.totalorder %s56, %s59
    %p68 = scmp.eq.s32.totalorder %s25, 1
    %p69 = por %p67, %p68
    %p70 = scmp.ne.s32.totalorder %s59, %s60
    %p71 = scmp.eq.s32.totalorder %s25, 0
    %p72 = por %p70, %p71
    %p73 = scmp.ne.s32.totalorder %s59, %s60
    %p74 = scmp.eq.s32.totalorder %s26, 1
    %p75 = por %p73, %p74
    %p77 = scmp.ne.s32.totalorder %s60, %s76
    %p78 = scmp.eq.s32.totalorder %s26, 0
    %p79 = por %p77, %p78
    %s81 = sadd.s32 %s80, 1
    %p84 = scmp.eq.s32.totalorder %s20, 1
    %p85 = scmp.ne.s32.totalorder %s80, %s82
    %p86 = scmp.eq.s32.totalorder %s20, 0
    %p87 = por %p85, %p86
    %p88 = scmp.ne.s32.totalorder %s80, %s82
    %p89 = scmp.eq.s32.totalorder %s25, 1
    %p90 = por %p88, %p89
    %p91 = scmp.ne.s32.totalorder %s82, %s83
    %p92 = scmp.eq.s32.totalorder %s25, 0
    %p93 = por %p91, %p92
    %p94 = scmp.ne.s32.totalorder %s82, %s83
    %p95 = scmp.eq.s32.totalorder %s26, 1
    %p96 = por %p94, %p95
    %p98 = scmp.ne.s32.totalorder %s83, %s97
    %p99 = scmp.eq.s32.totalorder %s26, 0
    %p100 = por %p98, %p99
    %s102 = sadd.s32 %s101, 1
    %p105 = scmp.eq.s32.totalorder %s20, 1
    %p106 = scmp.ne.s32.totalorder %s101, %s103
    %p107 = scmp.eq.s32.totalorder %s20, 0
    %p108 = por %p106, %p107
    %p109 = scmp.ne.s32.totalorder %s101, %s103
    %p110 = scmp.eq.s32.totalorder %s25, 1
    %p111 = por %p109, %p110
    %p112 = scmp.ne.s32.totalorder %s103, %s104
    %p113 = scmp.eq.s32.totalorder %s25, 0
    %p114 = por %p112, %p113
    %p115 = scmp.ne.s32.totalorder %s103, %s104
    %p116 = scmp.eq.s32.totalorder %s26, 1
    %p117 = por %p115, %p116
    %p119 = scmp.ne.s32.totalorder %s104, %s118
    %p120 = scmp.eq.s32.totalorder %s26, 0
    %p121 = por %p119, %p120
    %s123 = sadd.s32 %s122, 1
    %p126 = scmp.eq.s32.totalorder %s20, 1
    %p127 = scmp.ne.s32.totalorder %s122, %s124
    %p128 = scmp.eq.s32.totalorder %s20, 0
    %p129 = por %p127, %p128
    %p130 = scmp.ne.s32.totalorder %s122, %s124
    %p131 = scmp.eq.s32.totalorder %s25, 1
    %p132 = por %p130, %p131
    %p133 = scmp.ne.s32.totalorder %s124, %s125
    %p134 = scmp.eq.s32.totalorder %s25, 0
    %p135 = por %p133, %p134
    %p136 = scmp.ne.s32.totalorder %s124, %s125
    %p137 = scmp.eq.s32.totalorder %s26, 1
    %p138 = por %p136, %p137
    %p140 = scmp.ne.s32.totalorder %s125, %s139
    %p141 = scmp.eq.s32.totalorder %s26, 0
    %p142 = por %p140, %p141
    %s144 = sadd.s32 %s143, 1
    %p147 = scmp.eq.s32.totalorder %s20, 1
    %p148 = scmp.ne.s32.totalorder %s143, %s145
    %p149 = scmp.eq.s32.totalorder %s20, 0
    %p150 = por %p148, %p149
    %p151 = scmp.ne.s32.totalorder %s143, %s145
    %p152 = scmp.eq.s32.totalorder %s25, 1
    %p153 = por %p151, %p152
    %p154 = scmp.ne.s32.totalorder %s145, %s146
    %p155 = scmp.eq.s32.totalorder %s25, 0
    %p156 = por %p154, %p155
    %p157 = scmp.ne.s32.totalorder %s145, %s146
    %p158 = scmp.eq.s32.totalorder %s26, 1
    %p159 = por %p157, %p158
    %p161 = scmp.ne.s32.totalorder %s146, %s160
    %p162 = scmp.eq.s32.totalorder %s26, 0
    %p163 = por %p161, %p162
    %s165 = sadd.s32 %s164, 1
    %p168 = scmp.eq.s32.totalorder %s20, 1
    %p169 = scmp.ne.s32.totalorder %s164, %s166
    %p170 = scmp.eq.s32.totalorder %s20, 0
    %p171 = por %p169, %p170
    %p172 = scmp.ne.s32.totalorder %s164, %s166
    %p173 = scmp.eq.s32.totalorder %s25, 1
    %p174 = por %p172, %p173
    %p175 = scmp.ne.s32.totalorder %s166, %s167
    %p176 = scmp.eq.s32.totalorder %s25, 0
    %p177 = por %p175, %p176
    %p178 = scmp.ne.s32.totalorder %s166, %s167
    %p179 = scmp.eq.s32.totalorder %s26, 1
    %p180 = por %p178, %p179
    %p182 = scmp.ne.s32.totalorder %s167, %s181
    %p183 = scmp.eq.s32.totalorder %s26, 0
    %p184 = por %p182, %p183
    %s186 = sadd.s32 %s185, 1
    %p189 = scmp.eq.s32.totalorder %s20, 1
    %p190 = scmp.ne.s32.totalorder %s185, %s187
    %p191 = scmp.eq.s32.totalorder %s20, 0
    %p192 = por %p190, %p191
    %p193 = scmp.ne.s32.totalorder %s185, %s187
    %p194 = scmp.eq.s32.totalorder %s25, 1
    %p195 = por %p193, %p194
    %p196 = scmp.ne.s32.totalorder %s187, %s188
    %p197 = scmp.eq.s32.totalorder %s25, 0
    %p198 = por %p196, %p197
    %p199 = scmp.ne.s32.totalorder %s187, %s188
    %p200 = scmp.eq.s32.totalorder %s26, 1
    %p201 = por %p199, %p200
    %p203 = scmp.ne.s32.totalorder %s188, %s202
    %p204 = scmp.eq.s32.totalorder %s26, 0
    %p205 = por %p203, %p204
    %s207 = sadd.s32 %s206, 1
    %p210 = scmp.eq.s32.totalorder %s20, 1
    %p211 = scmp.ne.s32.totalorder %s206, %s208
    %p212 = scmp.eq.s32.totalorder %s20, 0
    %p213 = por %p211, %p212
    %p214 = scmp.ne.s32.totalorder %s206, %s208
    %p215 = scmp.eq.s32.totalorder %s25, 1
    %p216 = por %p214, %p215
    %p217 = scmp.ne.s32.totalorder %s208, %s209
    %p218 = scmp.eq.s32.totalorder %s25, 0
    %p219 = por %p217, %p218
    %p220 = scmp.ne.s32.totalorder %s208, %s209
    %p221 = scmp.eq.s32.totalorder %s26, 1
    %p222 = por %p220, %p221
    %p224 = scmp.ne.s32.totalorder %s209, %s223
    %p225 = scmp.eq.s32.totalorder %s26, 0
    %p226 = por %p224, %p225
    %s228 = sadd.s32 %s227, 1
    %p231 = scmp.eq.s32.totalorder %s20, 1
    %p232 = scmp.ne.s32.totalorder %s227, %s229
    %p233 = scmp.eq.s32.totalorder %s20, 0
    %p234 = por %p232, %p233
    %p235 = scmp.ne.s32.totalorder %s227, %s229
    %p236 = scmp.eq.s32.totalorder %s25, 1
    %p237 = por %p235, %p236
    %p238 = scmp.ne.s32.totalorder %s229, %s230
    %p239 = scmp.eq.s32.totalorder %s25, 0
    %p240 = por %p238, %p239
    %p241 = scmp.ne.s32.totalorder %s229, %s230
    %p242 = scmp.eq.s32.totalorder %s26, 1
    %p243 = por %p241, %p242
    %p245 = scmp.ne.s32.totalorder %s230, %s244
    %p246 = scmp.eq.s32.totalorder %s26, 0
    %p247 = por %p245, %p246
    %s249 = sadd.s32 %s248, 1
    %p252 = scmp.eq.s32.totalorder %s20, 1
    %p253 = scmp.ne.s32.totalorder %s248, %s250
    %p254 = scmp.eq.s32.totalorder %s20, 0
    %p255 = por %p253, %p254
    %p256 = scmp.ne.s32.totalorder %s248, %s250
    %p257 = scmp.eq.s32.totalorder %s25, 1
    %p258 = por %p256, %p257
    %p259 = scmp.ne.s32.totalorder %s250, %s251
    %p260 = scmp.eq.s32.totalorder %s25, 0
    %p261 = por %p259, %p260
    %p262 = scmp.ne.s32.totalorder %s250, %s251
    %p263 = scmp.eq.s32.totalorder %s26, 1
    %p264 = por %p262, %p263
    %p266 = scmp.ne.s32.totalorder %s251, %s265
    %p267 = scmp.eq.s32.totalorder %s26, 0
    %p268 = por %p266, %p267
    %s270 = sadd.s32 %s269, 1
    %p273 = scmp.eq.s32.totalorder %s20, 1
    %p274 = scmp.ne.s32.totalorder %s269, %s271
    %p275 = scmp.eq.s32.totalorder %s20, 0
    %p276 = por %p274, %p275
    %p277 = scmp.ne.s32.totalorder %s269, %s271
    %p278 = scmp.eq.s32.totalorder %s25, 1
    %p279 = por %p277, %p278
    %p280 = scmp.ne.s32.totalorder %s271, %s272
    %p281 = scmp.eq.s32.totalorder %s25, 0
    %p282 = por %p280, %p281
    %p283 = scmp.ne.s32.totalorder %s271, %s272
    %p284 = scmp.eq.s32.totalorder %s26, 1
    %p285 = por %p283, %p284
    %p287 = scmp.ne.s32.totalorder %s272, %s286
    %p288 = scmp.eq.s32.totalorder %s26, 0
    %p289 = por %p287, %p288
    %s290 = ssub.s32 %s20, %s27
    %p291 = scmp.eq.s32.totalorder %s290, 0
    %s293 = sadd.s32 %s292, 1
    %s294 = scalar_select %p291, %s292, %s293
    %p297 = pneg %p291
    %p298 = scmp.eq.s32.totalorder %s20, 1
    %p299 = por %p297, %p298
    %p300 = scmp.ne.s32.totalorder %s292, %s295
    %p301 = scmp.eq.s32.totalorder %s20, 0
    %p302 = por %p300, %p301
    %p303 = scmp.ne.s32.totalorder %s292, %s295
    %p304 = scmp.eq.s32.totalorder %s25, 1
    %p305 = por %p303, %p304
    %p306 = scmp.ne.s32.totalorder %s295, %s296
    %p307 = scmp.eq.s32.totalorder %s25, 0
    %p308 = por %p306, %p307
    %p309 = scmp.ne.s32.totalorder %s295, %s296
    %p310 = scmp.eq.s32.totalorder %s26, 1
    %p311 = por %p309, %p310
    %p313 = scmp.ne.s32.totalorder %s296, %s312
    %p314 = scmp.eq.s32.totalorder %s26, 0
    %p315 = por %p313, %p314
    %s316 = ssub.s32 %s20, %s27
    %p317 = scmp.eq.s32.totalorder %s316, 0
    %s319 = sadd.s32 %s318, 1
    %s320 = scalar_select %p317, %s318, %s319
    %p323 = pneg %p317
    %p324 = scmp.eq.s32.totalorder %s20, 1
    %p325 = por %p323, %p324
    %p326 = scmp.ne.s32.totalorder %s318, %s321
    %p327 = scmp.eq.s32.totalorder %s20, 0
    %p328 = por %p326, %p327
    %p329 = scmp.ne.s32.totalorder %s318, %s321
    %p330 = scmp.eq.s32.totalorder %s25, 1
    %p331 = por %p329, %p330
    %p332 = scmp.ne.s32.totalorder %s321, %s322
    %p333 = scmp.eq.s32.totalorder %s25, 0
    %p334 = por %p332, %p333
    %p335 = scmp.ne.s32.totalorder %s321, %s322
    %p336 = scmp.eq.s32.totalorder %s26, 1
    %p337 = por %p335, %p336
    %p339 = scmp.ne.s32.totalorder %s322, %s338
    %p340 = scmp.eq.s32.totalorder %s26, 0
    %p341 = por %p339, %p340
    %p342 = scmp.le.s32.totalorder 1, %s20
    %p343 = scmp.lt.s32.totalorder %s20, 3
    %p344 = pnand %p342, %p343
    %p345 = pneg %p344
    // Predicated region
    $region9: #{tpu_custom_call.1} parent=5 // pred_check
      _
    $region10: #{tpu_custom_call.1} parent=5 // pred_check_branch
      %347 = sbr.rel (%p344) target = $region12
    $region11: #{tpu_custom_call.1} parent=5 // pred_region
      %s348 = ssub.s32 %s20, 1
      // Predicated region
      $region13: #{tpu_custom_call.1} parent=11 // pred_check
        %p349 = pneg %p93
      $region14: #{tpu_custom_call.1} parent=11 // pred_check_branch
        %351 = sbr.rel (%p349) target = $region16
      $region15: #{tpu_custom_call.1} parent=11 // pred_region
        _
      $region16: #{tpu_custom_call.1} parent=11 // pred_fallthru
        _
      // Predicated region
      $region17: #{tpu_custom_call.1} parent=11 // pred_check
        %p352 = pneg %p114
      $region18: #{tpu_custom_call.1} parent=11 // pred_check_branch
        %354 = sbr.rel (%p352) target = $region20
      $region19: #{tpu_custom_call.1} parent=11 // pred_region
        _
      $region20: #{tpu_custom_call.1} parent=11 // pred_fallthru
        _
      // Predicated region
      $region21: #{tpu_custom_call.1} parent=11 // pred_check
        %p355 = pneg %p135
      $region22: #{tpu_custom_call.1} parent=11 // pred_check_branch
        %357 = sbr.rel (%p355) target = $region24
      $region23: #{tpu_custom_call.1} parent=11 // pred_region
        _
      $region24: #{tpu_custom_call.1} parent=11 // pred_fallthru
        _
      // Predicated region
      $region25: #{tpu_custom_call.1} parent=11 // pred_check
        %p358 = pneg %p156
      $region26: #{tpu_custom_call.1} parent=11 // pred_check_branch
        %360 = sbr.rel (%p358) target = $region28
      $region27: #{tpu_custom_call.1} parent=11 // pred_region
        _
      $region28: #{tpu_custom_call.1} parent=11 // pred_fallthru
        _
      // Predicated region
      $region29: #{tpu_custom_call.1} parent=11 // pred_check
        %p361 = pneg %p177
      $region30: #{tpu_custom_call.1} parent=11 // pred_check_branch
        %363 = sbr.rel (%p361) target = $region32
      $region31: #{tpu_custom_call.1} parent=11 // pred_region
        _
      $region32: #{tpu_custom_call.1} parent=11 // pred_fallthru
        _
      // Predicated region
      $region33: #{tpu_custom_call.1} parent=11 // pred_check
        %p364 = pneg %p198
      $region34: #{tpu_custom_call.1} parent=11 // pred_check_branch
        %366 = sbr.rel (%p364) target = $region36
      $region35: #{tpu_custom_call.1} parent=11 // pred_region
        _
      $region36: #{tpu_custom_call.1} parent=11 // pred_fallthru
        _
      // Predicated region
      $region37: #{tpu_custom_call.1} parent=11 // pred_check
        %p367 = pneg %p219
      $region38: #{tpu_custom_call.1} parent=11 // pred_check_branch
        %369 = sbr.rel (%p367) target = $region40
      $region39: #{tpu_custom_call.1} parent=11 // pred_region
        _
      $region40: #{tpu_custom_call.1} parent=11 // pred_fallthru
        _
      // Predicated region
      $region41: #{tpu_custom_call.1} parent=11 // pred_check
        %p370 = pneg %p240
      $region42: #{tpu_custom_call.1} parent=11 // pred_check_branch
        %372 = sbr.rel (%p370) target = $region44
      $region43: #{tpu_custom_call.1} parent=11 // pred_region
        _
      $region44: #{tpu_custom_call.1} parent=11 // pred_fallthru
        _
      // Predicated region
      $region45: #{tpu_custom_call.1} parent=11 // pred_check
        %p373 = pneg %p261
      $region46: #{tpu_custom_call.1} parent=11 // pred_check_branch
        %375 = sbr.rel (%p373) target = $region48
      $region47: #{tpu_custom_call.1} parent=11 // pred_region
        _
      $region48: #{tpu_custom_call.1} parent=11 // pred_fallthru
        _
      // Predicated region
      $region49: #{tpu_custom_call.1} parent=11 // pred_check
        %p376 = pneg %p282
      $region50: #{tpu_custom_call.1} parent=11 // pred_check_branch
        %378 = sbr.rel (%p376) target = $region52
      $region51: #{tpu_custom_call.1} parent=11 // pred_region
        _
      $region52: #{tpu_custom_call.1} parent=11 // pred_fallthru
        _
    $region12: #{tpu_custom_call.1} parent=5 // pred_fallthru
      _
    %p379 = scmp.lt.s32.totalorder %s20, 2
    // Predicated region
    $region53: #{tpu_custom_call.1} parent=5 // pred_check
      %p380 = pneg %p379
    $region54: #{tpu_custom_call.1} parent=5 // pred_check_branch
      %382 = sbr.rel (%p380) target = $region56
    $region55: #{tpu_custom_call.1} parent=5 // pred_region
      // Predicated region
      $region57: #{tpu_custom_call.1} parent=55 // pred_check
        %p383 = pneg %p40
      $region58: #{tpu_custom_call.1} parent=55 // pred_check_branch
        %385 = sbr.rel (%p383) target = $region60
      $region59: #{tpu_custom_call.1} parent=55 // pred_region
        %p386 = scmp.lt.s32.totalorder %s20, 1
        %s387 = scalar_select %p386, %s20, 1
        %s388 = smul.addr %s387, 8
        %s389 = smul.addr %s388, 8
        %s390 = scalar_lea.vmem %s0, %s389
      $region60: #{tpu_custom_call.1} parent=55 // pred_fallthru
        _
      // Predicated region
      $region61: #{tpu_custom_call.1} parent=55 // pred_check
        %p391 = pneg %p66
      $region62: #{tpu_custom_call.1} parent=55 // pred_check_branch
        %393 = sbr.rel (%p391) target = $region64
      $region63: #{tpu_custom_call.1} parent=55 // pred_region
        %p394 = scmp.lt.s32.totalorder %s20, 1
        %s395 = scalar_select %p394, %s20, 1
        %s396 = smul.addr %s395, 8
        %s397 = smul.addr %s396, 8
        %s398 = scalar_lea.vmem %s1, %s397
      $region64: #{tpu_custom_call.1} parent=55 // pred_fallthru
        _
    $region56: #{tpu_custom_call.1} parent=5 // pred_fallthru
      _
    %p399 = scmp.le.s32.totalorder 1, %s20
    %p400 = scmp.lt.s32.totalorder %s20, 3
    %p401 = pnand %p399, %p400
    %p402 = pneg %p401
    // Predicated region
    $region65: #{tpu_custom_call.1} parent=5 // pred_check
      _
    $region66: #{tpu_custom_call.1} parent=5 // pred_check_branch
      %404 = sbr.rel (%p401) target = $region68
    $region67: #{tpu_custom_call.1} parent=5 // pred_region
      %s405 = ssub.s32 %s20, 1
      %p406 = scmp.lt.s32.totalorder %s25, 1
      %s407 = scalar_select %p406, %s25, 1
      %s408 = smul.addr %s407, 8
      %s409 = smul.addr %s408, 8
      %s410 = scalar_lea.vmem %s0, %s409
      %p411 = pneg %p46
      %p412 = pneg %p43
      %p413 = scmp.lt.s32.totalorder %s25, 1
      %s414 = scalar_select %p413, %s25, 1
      %s415 = smul.addr %s414, 8
      %s416 = smul.addr %s415, 8
      %s417 = scalar_lea.vmem %s1, %s416
      %p418 = pneg %p72
      %p419 = pneg %p69
      %p420 = pneg %p93
      %p421 = pneg %p90
      %p422 = pneg %p114
      %p423 = pneg %p111
      %p424 = pneg %p135
      %p425 = pneg %p132
      %p426 = pneg %p156
      %p427 = pneg %p153
      %p428 = pneg %p177
      %p429 = pneg %p174
      %p430 = pneg %p198
      %p431 = pneg %p195
      %p432 = pneg %p219
      %p433 = pneg %p216
      %p434 = pneg %p240
      %p435 = pneg %p237
      %p436 = pneg %p261
      %p437 = pneg %p258
      %p438 = pneg %p282
      %p439 = pneg %p279
      %p440 = pneg %p308
      %p441 = pneg %p305
      %p442 = scmp.lt.s32.totalorder %s25, 1
      %s443 = scalar_select %p442, %s25, 1
      %s444 = smul.addr %s443, 8
      %s445 = smul.addr %s444, 8
      %s446 = scalar_lea.vmem %s12, %s445
      %p447 = pneg %p334
      %p448 = pneg %p331
      %p449 = scmp.lt.s32.totalorder %s25, 1
      %s450 = scalar_select %p449, %s25, 1
      %s451 = smul.addr %s450, 8
      %s452 = smul.addr %s451, 8
      %s453 = scalar_lea.vmem %s13, %s452
      %p454 = scmp.lt.s32.totalorder %s25, 1
      %s455 = scalar_select %p454, %s25, 1
      %s456 = smul.addr %s455, 8
      %s457 = smul.addr %s456, 8
      %s458 = scalar_lea.vmem %s0, %s457
      %p459 = scmp.lt.s32.totalorder %s25, 1
      %s460 = scalar_select %p459, %s25, 1
      %s461 = smul.addr %s460, 8
      %s462 = smul.addr %s461, 8
      %s463 = scalar_lea.vmem %s1, %s462
      %p464 = scmp.lt.s32.totalorder %s25, 1
      %s465 = scalar_select %p464, %s25, 1
      %s466 = smul.addr %s465, 8
      %s467 = smul.addr %s466, 8
      %s468 = scalar_lea.vmem %s12, %s467
      %p469 = scmp.lt.s32.totalorder %s25, 1
      %s470 = scalar_select %p469, %s25, 1
      %s471 = smul.addr %s470, 8
      %s472 = smul.addr %s471, 8
      %s473 = scalar_lea.vmem %s13, %s472
      %v475 = vld [vmem:[%s458] sm:$0xff]
      %v476 = vld [vmem:[%s458 + $0x8] sm:$0xff]
      %v477 = vld [vmem:[%s458 + $0x10] sm:$0xff]
      %v478 = vld [vmem:[%s458 + $0x18] sm:$0xff]
      %v479 = vld [vmem:[%s458 + $0x20] sm:$0xff]
      %v480 = vld [vmem:[%s458 + $0x28] sm:$0xff]
      %v481 = vld [vmem:[%s458 + $0x30] sm:$0xff]
      %v482 = vld [vmem:[%s458 + $0x38] sm:$0xff]
      %v483 = vld [vmem:[%s463] sm:$0xff]
      %v484 = vld [vmem:[%s463 + $0x8] sm:$0xff]
      %v485 = vld [vmem:[%s463 + $0x10] sm:$0xff]
      %v486 = vld [vmem:[%s463 + $0x18] sm:$0xff]
      %v487 = vld [vmem:[%s463 + $0x20] sm:$0xff]
      %v488 = vld [vmem:[%s463 + $0x28] sm:$0xff]
      %v489 = vld [vmem:[%s463 + $0x30] sm:$0xff]
      %v490 = vld [vmem:[%s463 + $0x38] sm:$0xff]
      %v491 = vpack.c.bf16 %v476, %v475
      %v492 = vpack.c.bf16 %v478, %v477
      %v493 = vpack.c.bf16 %v480, %v479
      %v494 = vpack.c.bf16 %v482, %v481
      %v495 = vpack.c.bf16 %v484, %v483
      %v496 = vpack.c.bf16 %v486, %v485
      %v497 = vpack.c.bf16 %v488, %v487
      %v498 = vpack.c.bf16 %v490, %v489
      %v499 = vld [vmem:[%s2] sm:$0xf]
      %v500 = vld [vmem:[%s2 + $0x4] sm:$0xf]
      %v501 = vld [vmem:[%s2 + $0x8] sm:$0xf]
      %v502 = vld [vmem:[%s2 + $0xc] sm:$0xf]
      %v503 = vld [vmem:[%s3] sm:$0x1]
      %v505 = vperm.slane %v503, 0
      %v511 = vunpack.c.l.b16 %v499
      %v512 = vunpack.c.l.b16 %v500
      %v513 = vunpack.c.l.b16 %v501
      %v514 = vunpack.c.l.b16 %v502
      %v515 = vpack.c.b16 %v512, %v511
      %v516 = vpack.c.b16 %v514, %v513
      %vm519 = vcmask 261120
      %v521 = vsel %vm519, %v491, 0
      %v524 = vsel %vm519, %v492, 0
      %v527 = vsel %vm519, %v493, 0
      %v530 = vsel %vm519, %v494, 0
      %532 = vmatpush.bf16.msra.mxu0 0
      %533 = vmatpush.bf16.msra.mxu0 0
      %534 = vmatpush.bf16.msra.mxu0 0
      %535 = vmatpush.bf16.msra.mxu0 0
      %536 = vmatpush.bf16.msra.mxu0 0
      %537 = vmatpush.bf16.msra.mxu0 0
      %538 = vmatpush.bf16.msra.mxu0 %v516
      %539 = vmatpush.bf16.msra.mxu0 %v515
      %540 = vmatmul.bf16.gmra.mxu0 %v521
      %v541 = vpop.f32.mrf.mxu0
      %v542 = vadd.f32 %v505, %v541
      %v543 = vpop.f32.mrf.mxu0
      %v544 = vadd.f32 %v505, %v543
      %545 = vmatmul.bf16.gmra.mxu0 %v524
      %v546 = vpop.f32.mrf.mxu0
      %v547 = vadd.f32 %v505, %v546
      %v548 = vpop.f32.mrf.mxu0
      %v549 = vadd.f32 %v505, %v548
      %550 = vmatmul.bf16.gmra.mxu0 %v527
      %v551 = vpop.f32.mrf.mxu0
      %v552 = vadd.f32 %v505, %v551
      %v553 = vpop.f32.mrf.mxu0
      %v554 = vadd.f32 %v505, %v553
      %555 = vmatmul.bf16.gmra.mxu0 %v530
      %v556 = vpop.f32.mrf.mxu0
      %v557 = vadd.f32 %v505, %v556
      %v558 = vpop.f32.mrf.mxu0
      %v559 = vadd.f32 %v505, %v558
      %560 = vdwg.mxu0
      %v561 = vld [vmem:[%s4] sm:$0xf]
      %v562 = vld [vmem:[%s4 + $0x4] sm:$0xf]
      %v563 = vld [vmem:[%s4 + $0x8] sm:$0xf]
      %v564 = vld [vmem:[%s4 + $0xc] sm:$0xf]
      %v565 = vld [vmem:[%s5] sm:$0x1]
      %v567 = vperm.slane %v565, 0
      %v573 = vunpack.c.l.b16 %v561
      %v574 = vunpack.c.l.b16 %v562
      %v575 = vunpack.c.l.b16 %v563
      %v576 = vunpack.c.l.b16 %v564
      %v577 = vpack.c.b16 %v574, %v573
      %v578 = vpack.c.b16 %v576, %v575
      %v582 = vsel %vm519, %v495, 0
      %v585 = vsel %vm519, %v496, 0
      %v588 = vsel %vm519, %v497, 0
      %v591 = vsel %vm519, %v498, 0
      %593 = vmatpush.bf16.msra.mxu0 0
      %594 = vmatpush.bf16.msra.mxu0 0
      %595 = vmatpush.bf16.msra.mxu0 0
      %596 = vmatpush.bf16.msra.mxu0 0
      %597 = vmatpush.bf16.msra.mxu0 0
      %598 = vmatpush.bf16.msra.mxu0 0
      %599 = vmatpush.bf16.msra.mxu0 %v578
      %600 = vmatpush.bf16.msra.mxu0 %v577
      %601 = vmatmul.bf16.gmra.mxu0 %v582
      %v602 = vpop.f32.mrf.mxu0
      %v603 = vadd.f32 %v567, %v602
      %v604 = vpop.f32.mrf.mxu0
      %v605 = vadd.f32 %v567, %v604
      %606 = vmatmul.bf16.gmra.mxu0 %v585
      %v607 = vpop.f32.mrf.mxu0
      %v608 = vadd.f32 %v567, %v607
      %v609 = vpop.f32.mrf.mxu0
      %v610 = vadd.f32 %v567, %v609
      %611 = vmatmul.bf16.gmra.mxu0 %v588
      %v612 = vpop.f32.mrf.mxu0
      %v613 = vadd.f32 %v567, %v612
      %v614 = vpop.f32.mrf.mxu0
      %v615 = vadd.f32 %v567, %v614
      %616 = vmatmul.bf16.gmra.mxu0 %v591
      %v617 = vpop.f32.mrf.mxu0
      %v618 = vadd.f32 %v567, %v617
      %v619 = vpop.f32.mrf.mxu0
      %v620 = vadd.f32 %v567, %v619
      %621 = vdwg.mxu0
      %v622 = vpack.c.bf16 %v544, %v542
      %v623 = vpack.c.bf16 %v549, %v547
      %v624 = vpack.c.bf16 %v554, %v552
      %v625 = vpack.c.bf16 %v559, %v557
      %v626 = vpack.c.bf16 %v605, %v603
      %v627 = vpack.c.bf16 %v610, %v608
      %v628 = vpack.c.bf16 %v615, %v613
      %v629 = vpack.c.bf16 %v620, %v618
      %634 = vrot.lane.b32.xlu0 %v622, 96
      %v635 = vpop.permute.xlu0 %634
      %636 = vrot.lane.b32.xlu0 %v623, 96
      %v637 = vpop.permute.xlu0 %636
      %638 = vrot.lane.b32.xlu0 %v624, 96
      %v639 = vpop.permute.xlu0 %638
      %640 = vrot.lane.b32.xlu0 %v625, 96
      %v641 = vpop.permute.xlu0 %640
      %v643 = vsel %vm519, %v622, 0
      %v646 = vsel %vm519, %v623, 0
      %v649 = vsel %vm519, %v624, 0
      %v652 = vsel %vm519, %v625, 0
      %v655 = vsel %vm519, %v635, 0
      %v658 = vsel %vm519, %v637, 0
      %v661 = vsel %vm519, %v639, 0
      %v664 = vsel %vm519, %v641, 0
      %666 = vmatpush.bf16.xpose.msra.mxu0 0
      %667 = vmatpush.bf16.xpose.msra.mxu0 0
      %668 = vmatpush.bf16.xpose.msra.mxu0 0
      %669 = vmatpush.bf16.xpose.msra.mxu0 0
      %670 = vmatpush.bf16.xpose.msra.mxu0 %v664
      %671 = vmatpush.bf16.xpose.msra.mxu0 %v661
      %672 = vmatpush.bf16.xpose.msra.mxu0 %v658
      %673 = vmatpush.bf16.xpose.msra.mxu0 %v655
      %674 = vmatmul.bf16.gmra.mxu0 %v643
      %v675 = vpop.f32.mrf.mxu0
      %v676 = vadd.f32 0.0, %v675
      %v677 = vpop.f32.mrf.mxu0
      %v678 = vadd.f32 0.0, %v677
      %679 = vmatmul.bf16.gmra.mxu0 %v646
      %v680 = vpop.f32.mrf.mxu0
      %v681 = vadd.f32 0.0, %v680
      %v682 = vpop.f32.mrf.mxu0
      %v683 = vadd.f32 0.0, %v682
      %684 = vmatmul.bf16.gmra.mxu0 %v649
      %v685 = vpop.f32.mrf.mxu0
      %v686 = vadd.f32 0.0, %v685
      %v687 = vpop.f32.mrf.mxu0
      %v688 = vadd.f32 0.0, %v687
      %689 = vmatmul.bf16.gmra.mxu0 %v652
      %v690 = vpop.f32.mrf.mxu0
      %v691 = vadd.f32 0.0, %v690
      %v692 = vpop.f32.mrf.mxu0
      %v693 = vadd.f32 0.0, %v692
      %694 = vdwg.mxu0
      %vm695 = vcmask 523264
      %v696 = vsel %vm695, %v676, -inf
      %697 = vmax.xlane.f32.xlu0 %v696
      %v698 = vpop.xlane.xlu0 %697
      %v699 = vsel %vm695, %v678, -inf
      %700 = vmax.xlane.f32.xlu0 %v699
      %v701 = vpop.xlane.xlu0 %700
      %v702 = vsel %vm695, %v681, -inf
      %703 = vmax.xlane.f32.xlu0 %v702
      %v704 = vpop.xlane.xlu0 %703
      %v705 = vsel %vm695, %v683, -inf
      %706 = vmax.xlane.f32.xlu0 %v705
      %v707 = vpop.xlane.xlu0 %706
      %v708 = vsel %vm695, %v686, -inf
      %709 = vmax.xlane.f32.xlu0 %v708
      %v710 = vpop.xlane.xlu0 %709
      %v711 = vsel %vm695, %v688, -inf
      %712 = vmax.xlane.f32.xlu0 %v711
      %v713 = vpop.xlane.xlu0 %712
      %v714 = vsel %vm695, %v691, -inf
      %715 = vmax.xlane.f32.xlu0 %v714
      %v716 = vpop.xlane.xlu0 %715
      %v717 = vsel %vm695, %v693, -inf
      %718 = vmax.xlane.f32.xlu0 %v717
      %v719 = vpop.xlane.xlu0 %718
      %v720 = vsub.f32 %v676, %v698
      %v721 = vsub.f32 %v678, %v701
      %v722 = vsub.f32 %v681, %v704
      %v723 = vsub.f32 %v683, %v707
      %v724 = vsub.f32 %v686, %v710
      %v725 = vsub.f32 %v688, %v713
      %v726 = vsub.f32 %v691, %v716
      %v727 = vsub.f32 %v693, %v719
      %v728 = vmul.f32 %v720, 1.442695
      %v729 = vpow.pop %v728
      %v730 = vmul.f32 %v721, 1.442695
      %v731 = vpow.pop %v730
      %v732 = vmul.f32 %v722, 1.442695
      %v733 = vpow.pop %v732
      %v734 = vmul.f32 %v723, 1.442695
      %v735 = vpow.pop %v734
      %v736 = vmul.f32 %v724, 1.442695
      %v737 = vpow.pop %v736
      %v738 = vmul.f32 %v725, 1.442695
      %v739 = vpow.pop %v738
      %v740 = vmul.f32 %v726, 1.442695
      %v741 = vpow.pop %v740
      %v742 = vmul.f32 %v727, 1.442695
      %v743 = vpow.pop %v742
      %v744 = vsel %vm695, %v729, 0.0
      %745 = vadd.xlane.f32.xlu0 %v744
      %v746 = vpop.xlane.xlu0 %745
      %v747 = vsel %vm695, %v731, 0.0
      %748 = vadd.xlane.f32.xlu0 %v747
      %v749 = vpop.xlane.xlu0 %748
      %v750 = vsel %vm695, %v733, 0.0
      %751 = vadd.xlane.f32.xlu0 %v750
      %v752 = vpop.xlane.xlu0 %751
      %v753 = vsel %vm695, %v735, 0.0
      %754 = vadd.xlane.f32.xlu0 %v753
      %v755 = vpop.xlane.xlu0 %754
      %v756 = vsel %vm695, %v737, 0.0
      %757 = vadd.xlane.f32.xlu0 %v756
      %v758 = vpop.xlane.xlu0 %757
      %v759 = vsel %vm695, %v739, 0.0
      %760 = vadd.xlane.f32.xlu0 %v759
      %v761 = vpop.xlane.xlu0 %760
      %v762 = vsel %vm695, %v741, 0.0
      %763 = vadd.xlane.f32.xlu0 %v762
      %v764 = vpop.xlane.xlu0 %763
      %v765 = vsel %vm695, %v743, 0.0
      %766 = vadd.xlane.f32.xlu0 %v765
      %v767 = vpop.xlane.xlu0 %766
      %v768 = vrcp.pop %v746
      %v769 = vrcp.pop %v749
      %v770 = vrcp.pop %v752
      %v771 = vrcp.pop %v755
      %v772 = vrcp.pop %v758
      %v773 = vrcp.pop %v761
      %v774 = vrcp.pop %v764
      %v775 = vrcp.pop %v767
      %v776 = vmul.f32 %v729, %v768
      %v777 = vmul.f32 %v731, %v769
      %v778 = vmul.f32 %v733, %v770
      %v779 = vmul.f32 %v735, %v771
      %v780 = vmul.f32 %v737, %v772
      %v781 = vmul.f32 %v739, %v773
      %v782 = vmul.f32 %v741, %v774
      %v783 = vmul.f32 %v743, %v775
      %v785 = vsel %vm519, %v626, 0
      %v788 = vsel %vm519, %v627, 0
      %v791 = vsel %vm519, %v628, 0
      %v794 = vsel %vm519, %v629, 0
      %796 = vmatpush.bf16.xpose.msra.mxu0 0
      %797 = vmatpush.bf16.xpose.msra.mxu0 0
      %798 = vmatpush.bf16.xpose.msra.mxu0 0
      %799 = vmatpush.bf16.xpose.msra.mxu0 0
      %800 = vmatpush.bf16.xpose.msra.mxu0 %v794
      %801 = vmatpush.bf16.xpose.msra.mxu0 %v791
      %802 = vmatpush.bf16.xpose.msra.mxu0 %v788
      %803 = vmatpush.bf16.xpose.msra.mxu0 %v785
      %804 = vmatmul.bf16.gmra.mxu0 %v643
      %v805 = vpop.f32.mrf.mxu0
      %v806 = vadd.f32 0.0, %v805
      %v807 = vpop.f32.mrf.mxu0
      %v808 = vadd.f32 0.0, %v807
      %809 = vmatmul.bf16.gmra.mxu0 %v646
      %v810 = vpop.f32.mrf.mxu0
      %v811 = vadd.f32 0.0, %v810
      %v812 = vpop.f32.mrf.mxu0
      %v813 = vadd.f32 0.0, %v812
      %814 = vmatmul.bf16.gmra.mxu0 %v649
      %v815 = vpop.f32.mrf.mxu0
      %v816 = vadd.f32 0.0, %v815
      %v817 = vpop.f32.mrf.mxu0
      %v818 = vadd.f32 0.0, %v817
      %819 = vmatmul.bf16.gmra.mxu0 %v652
      %v820 = vpop.f32.mrf.mxu0
      %v821 = vadd.f32 0.0, %v820
      %v822 = vpop.f32.mrf.mxu0
      %v823 = vadd.f32 0.0, %v822
      %824 = vdwg.mxu0
      %v825 = vsel %vm695, %v806, -inf
      %826 = vmax.xlane.f32.xlu0 %v825
      %v827 = vpop.xlane.xlu0 %826
      %v828 = vsel %vm695, %v808, -inf
      %829 = vmax.xlane.f32.xlu0 %v828
      %v830 = vpop.xlane.xlu0 %829
      %v831 = vsel %vm695, %v811, -inf
      %832 = vmax.xlane.f32.xlu0 %v831
      %v833 = vpop.xlane.xlu0 %832
      %v834 = vsel %vm695, %v813, -inf
      %835 = vmax.xlane.f32.xlu0 %v834
      %v836 = vpop.xlane.xlu0 %835
      %v837 = vsel %vm695, %v816, -inf
      %838 = vmax.xlane.f32.xlu0 %v837
      %v839 = vpop.xlane.xlu0 %838
      %v840 = vsel %vm695, %v818, -inf
      %841 = vmax.xlane.f32.xlu0 %v840
      %v842 = vpop.xlane.xlu0 %841
      %v843 = vsel %vm695, %v821, -inf
      %844 = vmax.xlane.f32.xlu0 %v843
      %v845 = vpop.xlane.xlu0 %844
      %v846 = vsel %vm695, %v823, -inf
      %847 = vmax.xlane.f32.xlu0 %v846
      %v848 = vpop.xlane.xlu0 %847
      %v849 = vsub.f32 %v806, %v827
      %v850 = vsub.f32 %v808, %v830
      %v851 = vsub.f32 %v811, %v833
      %v852 = vsub.f32 %v813, %v836
      %v853 = vsub.f32 %v816, %v839
      %v854 = vsub.f32 %v818, %v842
      %v855 = vsub.f32 %v821, %v845
      %v856 = vsub.f32 %v823, %v848
      %v857 = vmul.f32 %v849, 1.442695
      %v858 = vpow.pop %v857
      %v859 = vmul.f32 %v850, 1.442695
      %v860 = vpow.pop %v859
      %v861 = vmul.f32 %v851, 1.442695
      %v862 = vpow.pop %v861
      %v863 = vmul.f32 %v852, 1.442695
      %v864 = vpow.pop %v863
      %v865 = vmul.f32 %v853, 1.442695
      %v866 = vpow.pop %v865
      %v867 = vmul.f32 %v854, 1.442695
      %v868 = vpow.pop %v867
      %v869 = vmul.f32 %v855, 1.442695
      %v870 = vpow.pop %v869
      %v871 = vmul.f32 %v856, 1.442695
      %v872 = vpow.pop %v871
      %v873 = vsel %vm695, %v858, 0.0
      %874 = vadd.xlane.f32.xlu0 %v873
      %v875 = vpop.xlane.xlu0 %874
      %v876 = vsel %vm695, %v860, 0.0
      %877 = vadd.xlane.f32.xlu0 %v876
      %v878 = vpop.xlane.xlu0 %877
      %v879 = vsel %vm695, %v862, 0.0
      %880 = vadd.xlane.f32.xlu0 %v879
      %v881 = vpop.xlane.xlu0 %880
      %v882 = vsel %vm695, %v864, 0.0
      %883 = vadd.xlane.f32.xlu0 %v882
      %v884 = vpop.xlane.xlu0 %883
      %v885 = vsel %vm695, %v866, 0.0
      %886 = vadd.xlane.f32.xlu0 %v885
      %v887 = vpop.xlane.xlu0 %886
      %v888 = vsel %vm695, %v868, 0.0
      %889 = vadd.xlane.f32.xlu0 %v888
      %v890 = vpop.xlane.xlu0 %889
      %v891 = vsel %vm695, %v870, 0.0
      %892 = vadd.xlane.f32.xlu0 %v891
      %v893 = vpop.xlane.xlu0 %892
      %v894 = vsel %vm695, %v872, 0.0
      %895 = vadd.xlane.f32.xlu0 %v894
      %v896 = vpop.xlane.xlu0 %895
      %v897 = vrcp.pop %v875
      %v898 = vrcp.pop %v878
      %v899 = vrcp.pop %v881
      %v900 = vrcp.pop %v884
      %v901 = vrcp.pop %v887
      %v902 = vrcp.pop %v890
      %v903 = vrcp.pop %v893
      %v904 = vrcp.pop %v896
      %v905 = vmul.f32 %v858, %v897
      %v906 = vmul.f32 %v860, %v898
      %v907 = vmul.f32 %v862, %v899
      %v908 = vmul.f32 %v864, %v900
      %v909 = vmul.f32 %v866, %v901
      %v910 = vmul.f32 %v868, %v902
      %v911 = vmul.f32 %v870, %v903
      %v912 = vmul.f32 %v872, %v904
      %v913 = vpack.c.bf16 %v777, %v776
      %v914 = vpack.c.bf16 %v779, %v778
      %v915 = vpack.c.bf16 %v781, %v780
      %v916 = vpack.c.bf16 %v783, %v782
      %917 = vrot.lane.b32.xlu0 %v622, 64
      %v918 = vpop.permute.xlu0 %917
      %919 = vrot.lane.b32.xlu0 %v623, 64
      %v920 = vpop.permute.xlu0 %919
      %921 = vrot.lane.b32.xlu0 %v624, 64
      %v922 = vpop.permute.xlu0 %921
      %923 = vrot.lane.b32.xlu0 %v625, 64
      %v924 = vpop.permute.xlu0 %923
      %v930 = vsel %vm695, %v913, 0
      %v933 = vsel %vm695, %v914, 0
      %v936 = vsel %vm695, %v915, 0
      %v939 = vsel %vm695, %v916, 0
      %941 = vmatpush.bf16.msra.mxu0 0
      %942 = vmatpush.bf16.msra.mxu0 0
      %943 = vmatpush.bf16.msra.mxu0 0
      %944 = vmatpush.bf16.msra.mxu0 0
      %945 = vmatpush.bf16.msra.mxu0 %v924
      %946 = vmatpush.bf16.msra.mxu0 %v922
      %947 = vmatpush.bf16.msra.mxu0 %v920
      %948 = vmatpush.bf16.msra.mxu0 %v918
      %949 = vmatmul.bf16.gmra.mxu0 %v930
      %v950 = vpop.f32.mrf.mxu0
      %v951 = vadd.f32 0.0, %v950
      %v952 = vpop.f32.mrf.mxu0
      %v953 = vadd.f32 0.0, %v952
      %954 = vmatmul.bf16.gmra.mxu0 %v933
      %v955 = vpop.f32.mrf.mxu0
      %v956 = vadd.f32 0.0, %v955
      %v957 = vpop.f32.mrf.mxu0
      %v958 = vadd.f32 0.0, %v957
      %959 = vmatmul.bf16.gmra.mxu0 %v936
      %v960 = vpop.f32.mrf.mxu0
      %v961 = vadd.f32 0.0, %v960
      %v962 = vpop.f32.mrf.mxu0
      %v963 = vadd.f32 0.0, %v962
      %964 = vmatmul.bf16.gmra.mxu0 %v939
      %v965 = vpop.f32.mrf.mxu0
      %v966 = vadd.f32 0.0, %v965
      %v967 = vpop.f32.mrf.mxu0
      %v968 = vadd.f32 0.0, %v967
      %969 = vdwg.mxu0
      %v970 = vpack.c.bf16 %v906, %v905
      %v971 = vpack.c.bf16 %v908, %v907
      %v972 = vpack.c.bf16 %v910, %v909
      %v973 = vpack.c.bf16 %v912, %v911
      %978 = vrot.lane.b32.xlu0 %v626, 96
      %v979 = vpop.permute.xlu0 %978
      %980 = vrot.lane.b32.xlu0 %v627, 96
      %v981 = vpop.permute.xlu0 %980
      %982 = vrot.lane.b32.xlu0 %v628, 96
      %v983 = vpop.permute.xlu0 %982
      %984 = vrot.lane.b32.xlu0 %v629, 96
      %v985 = vpop.permute.xlu0 %984
      %v991 = vsel %vm695, %v970, 0
      %v994 = vsel %vm695, %v971, 0
      %v997 = vsel %vm695, %v972, 0
      %v1000 = vsel %vm695, %v973, 0
      %1002 = vmatpush.bf16.msra.mxu0 0
      %1003 = vmatpush.bf16.msra.mxu0 0
      %1004 = vmatpush.bf16.msra.mxu0 0
      %1005 = vmatpush.bf16.msra.mxu0 0
      %1006 = vmatpush.bf16.msra.mxu0 %v985
      %1007 = vmatpush.bf16.msra.mxu0 %v983
      %1008 = vmatpush.bf16.msra.mxu0 %v981
      %1009 = vmatpush.bf16.msra.mxu0 %v979
      %1010 = vmatmul.bf16.gmra.mxu0 %v991
      %v1011 = vpop.f32.mrf.mxu0
      %v1012 = vadd.f32 0.0, %v1011
      %v1013 = vpop.f32.mrf.mxu0
      %v1014 = vadd.f32 0.0, %v1013
      %1015 = vmatmul.bf16.gmra.mxu0 %v994
      %v1016 = vpop.f32.mrf.mxu0
      %v1017 = vadd.f32 0.0, %v1016
      %v1018 = vpop.f32.mrf.mxu0
      %v1019 = vadd.f32 0.0, %v1018
      %1020 = vmatmul.bf16.gmra.mxu0 %v997
      %v1021 = vpop.f32.mrf.mxu0
      %v1022 = vadd.f32 0.0, %v1021
      %v1023 = vpop.f32.mrf.mxu0
      %v1024 = vadd.f32 0.0, %v1023
      %1025 = vmatmul.bf16.gmra.mxu0 %v1000
      %v1026 = vpop.f32.mrf.mxu0
      %v1027 = vadd.f32 0.0, %v1026
      %v1028 = vpop.f32.mrf.mxu0
      %v1029 = vadd.f32 0.0, %v1028
      %1030 = vdwg.mxu0
      %v1031 = vpack.c.bf16 %v953, %v951
      %v1032 = vpack.c.bf16 %v958, %v956
      %v1033 = vpack.c.bf16 %v963, %v961
      %v1034 = vpack.c.bf16 %v968, %v966
      %v1035 = vld [vmem:[%s6] sm:$0xf]
      %v1036 = vld [vmem:[%s6 + $0x4] sm:$0xf]
      %v1037 = vld [vmem:[%s6 + $0x8] sm:$0xf]
      %v1038 = vld [vmem:[%s6 + $0xc] sm:$0xf]
      %v1039 = vpack.c.bf16 %v1014, %v1012
      %v1040 = vpack.c.bf16 %v1019, %v1017
      %v1041 = vpack.c.bf16 %v1024, %v1022
      %v1042 = vpack.c.bf16 %v1029, %v1027
      %v1043 = vld [vmem:[%s7] sm:$0xf]
      %v1044 = vld [vmem:[%s7 + $0x4] sm:$0xf]
      %v1045 = vld [vmem:[%s7 + $0x8] sm:$0xf]
      %v1046 = vld [vmem:[%s7 + $0xc] sm:$0xf]
      %v1051 = vunpack.c.l.b16 %v1043
      %v1052 = vunpack.c.l.b16 %v1044
      %v1053 = vunpack.c.l.b16 %v1045
      %v1054 = vunpack.c.l.b16 %v1046
      %v1055 = vpack.c.b16 %v1052, %v1051
      %v1056 = vpack.c.b16 %v1054, %v1053
      %v1060 = vsel %vm519, %v1039, 0
      %v1063 = vsel %vm519, %v1040, 0
      %v1066 = vsel %vm519, %v1041, 0
      %v1069 = vsel %vm519, %v1042, 0
      %1071 = vmatpush.bf16.msra.mxu0 0
      %1072 = vmatpush.bf16.msra.mxu0 0
      %1073 = vmatpush.bf16.msra.mxu0 0
      %1074 = vmatpush.bf16.msra.mxu0 0
      %1075 = vmatpush.bf16.msra.mxu0 0
      %1076 = vmatpush.bf16.msra.mxu0 0
      %1077 = vmatpush.bf16.msra.mxu0 %v1056
      %1078 = vmatpush.bf16.msra.mxu0 %v1055
      %1079 = vmatmul.bf16.gmra.mxu0 %v1060
      %v1080 = vpop.f32.mrf.mxu0
      %v1081 = vadd.f32 0.0, %v1080
      %v1082 = vpop.f32.mrf.mxu0
      %v1083 = vadd.f32 0.0, %v1082
      %1084 = vmatmul.bf16.gmra.mxu0 %v1063
      %v1085 = vpop.f32.mrf.mxu0
      %v1086 = vadd.f32 0.0, %v1085
      %v1087 = vpop.f32.mrf.mxu0
      %v1088 = vadd.f32 0.0, %v1087
      %1089 = vmatmul.bf16.gmra.mxu0 %v1066
      %v1090 = vpop.f32.mrf.mxu0
      %v1091 = vadd.f32 0.0, %v1090
      %v1092 = vpop.f32.mrf.mxu0
      %v1093 = vadd.f32 0.0, %v1092
      %1094 = vmatmul.bf16.gmra.mxu0 %v1069
      %v1095 = vpop.f32.mrf.mxu0
      %v1096 = vadd.f32 0.0, %v1095
      %v1097 = vpop.f32.mrf.mxu0
      %v1098 = vadd.f32 0.0, %v1097
      %1099 = vdwg.mxu0
      %v1104 = vunpack.c.l.b16 %v1035
      %v1105 = vunpack.c.l.b16 %v1036
      %v1106 = vunpack.c.l.b16 %v1037
      %v1107 = vunpack.c.l.b16 %v1038
      %v1108 = vpack.c.b16 %v1105, %v1104
      %v1109 = vpack.c.b16 %v1107, %v1106
      %v1113 = vsel %vm519, %v1031, 0
      %v1116 = vsel %vm519, %v1032, 0
      %v1119 = vsel %vm519, %v1033, 0
      %v1122 = vsel %vm519, %v1034, 0
      %1124 = vmatpush.bf16.msra.mxu0 0
      %1125 = vmatpush.bf16.msra.mxu0 0
      %1126 = vmatpush.bf16.msra.mxu0 0
      %1127 = vmatpush.bf16.msra.mxu0 0
      %1128 = vmatpush.bf16.msra.mxu0 0
      %1129 = vmatpush.bf16.msra.mxu0 0
      %1130 = vmatpush.bf16.msra.mxu0 %v1109
      %1131 = vmatpush.bf16.msra.mxu0 %v1108
      %1132 = vmatmul.bf16.gmra.mxu0 %v1113
      %v1133 = vpop.f32.mrf.mxu0
      %v1134 = vadd.f32 %v1081, %v1133
      %v1135 = vpop.f32.mrf.mxu0
      %v1136 = vadd.f32 %v1083, %v1135
      %1137 = vmatmul.bf16.gmra.mxu0 %v1116
      %v1138 = vpop.f32.mrf.mxu0
      %v1139 = vadd.f32 %v1086, %v1138
      %v1140 = vpop.f32.mrf.mxu0
      %v1141 = vadd.f32 %v1088, %v1140
      %1142 = vmatmul.bf16.gmra.mxu0 %v1119
      %v1143 = vpop.f32.mrf.mxu0
      %v1144 = vadd.f32 %v1091, %v1143
      %v1145 = vpop.f32.mrf.mxu0
      %v1146 = vadd.f32 %v1093, %v1145
      %1147 = vmatmul.bf16.gmra.mxu0 %v1122
      %v1148 = vpop.f32.mrf.mxu0
      %v1149 = vadd.f32 %v1096, %v1148
      %v1150 = vpop.f32.mrf.mxu0
      %v1151 = vadd.f32 %v1098, %v1150
      %1152 = vdwg.mxu0
      %v1153 = vld [vmem:[%s8] sm:$0x1]
      %v1155 = vperm.slane %v1153, 0
      %v1157 = vadd.f32 %v1134, %v1155
      %v1158 = vadd.f32 %v1136, %v1155
      %v1159 = vadd.f32 %v1139, %v1155
      %v1160 = vadd.f32 %v1141, %v1155
      %v1161 = vadd.f32 %v1144, %v1155
      %v1162 = vadd.f32 %v1146, %v1155
      %v1163 = vadd.f32 %v1149, %v1155
      %v1164 = vadd.f32 %v1151, %v1155
      %v1165 = vpack.c.bf16 %v1158, %v1157
      %v1166 = vpack.c.bf16 %v1160, %v1159
      %v1167 = vpack.c.bf16 %v1162, %v1161
      %v1168 = vpack.c.bf16 %v1164, %v1163
      %v1169 = vld [vmem:[%s9] sm:$0xf]
      %v1170 = vld [vmem:[%s9 + $0x4] sm:$0xf]
      %v1171 = vld [vmem:[%s9 + $0x8] sm:$0xf]
      %v1172 = vld [vmem:[%s9 + $0xc] sm:$0xf]
      %v1173 = vld [vmem:[%s9 + $0x10] sm:$0xf]
      %v1174 = vld [vmem:[%s9 + $0x14] sm:$0xf]
      %v1175 = vld [vmem:[%s9 + $0x18] sm:$0xf]
      %v1176 = vld [vmem:[%s9 + $0x1c] sm:$0xf]
      %v1177 = vld [vmem:[%s10] sm:$0xf]
      %v1178 = vld [vmem:[%s10 + $0x4] sm:$0xf]
      %v1179 = vld [vmem:[%s10 + $0x8] sm:$0xf]
      %v1180 = vld [vmem:[%s10 + $0xc] sm:$0xf]
      %v1185 = vunpack.c.l.b16 %v1177
      %v1186 = vunpack.c.l.b16 %v1178
      %v1187 = vunpack.c.l.b16 %v1179
      %v1188 = vunpack.c.l.b16 %v1180
      %v1189 = vpack.c.b16 %v1186, %v1185
      %v1190 = vpack.c.b16 %v1188, %v1187
      %1193 = vmatpush.bf16.msra.mxu0 0
      %1194 = vmatpush.bf16.msra.mxu0 0
      %1195 = vmatpush.bf16.msra.mxu0 0
      %1196 = vmatpush.bf16.msra.mxu0 0
      %1197 = vmatpush.bf16.msra.mxu0 0
      %1198 = vmatpush.bf16.msra.mxu0 0
      %1199 = vmatpush.bf16.msra.mxu0 %v1190
      %1200 = vmatpush.bf16.msra.mxu0 %v1189
      %1201 = vmatmul.bf16.gmra.mxu0 %v521
      %v1202 = vpop.f32.mrf.mxu0
      %v1203 = vadd.f32 0.0, %v1202
      %v1204 = vpop.f32.mrf.mxu0
      %v1205 = vadd.f32 0.0, %v1204
      %1206 = vmatmul.bf16.gmra.mxu0 %v524
      %v1207 = vpop.f32.mrf.mxu0
      %v1208 = vadd.f32 0.0, %v1207
      %v1209 = vpop.f32.mrf.mxu0
      %v1210 = vadd.f32 0.0, %v1209
      %1211 = vmatmul.bf16.gmra.mxu0 %v527
      %v1212 = vpop.f32.mrf.mxu0
      %v1213 = vadd.f32 0.0, %v1212
      %v1214 = vpop.f32.mrf.mxu0
      %v1215 = vadd.f32 0.0, %v1214
      %1216 = vmatmul.bf16.gmra.mxu0 %v530
      %v1217 = vpop.f32.mrf.mxu0
      %v1218 = vadd.f32 0.0, %v1217
      %v1219 = vpop.f32.mrf.mxu0
      %v1220 = vadd.f32 0.0, %v1219
      %1221 = vdwg.mxu0
      %v1230 = vunpack.c.l.b16 %v1169
      %v1231 = vunpack.c.l.b16 %v1170
      %v1232 = vunpack.c.l.b16 %v1171
      %v1233 = vunpack.c.l.b16 %v1172
      %v1234 = vunpack.c.l.b16 %v1173
      %v1235 = vunpack.c.l.b16 %v1174
      %v1236 = vunpack.c.l.b16 %v1175
      %v1237 = vunpack.c.l.b16 %v1176
      %v1238 = vpack.c.b16 %v1231, %v1230
      %v1239 = vpack.c.b16 %v1233, %v1232
      %v1240 = vpack.c.b16 %v1235, %v1234
      %v1241 = vpack.c.b16 %v1237, %v1236
      %v1247 = vsel %vm695, %v1165, 0
      %v1250 = vsel %vm695, %v1166, 0
      %v1253 = vsel %vm695, %v1167, 0
      %v1256 = vsel %vm695, %v1168, 0
      %1258 = vmatpush.bf16.msra.mxu0 0
      %1259 = vmatpush.bf16.msra.mxu0 0
      %1260 = vmatpush.bf16.msra.mxu0 0
      %1261 = vmatpush.bf16.msra.mxu0 0
      %1262 = vmatpush.bf16.msra.mxu0 %v1241
      %1263 = vmatpush.bf16.msra.mxu0 %v1240
      %1264 = vmatpush.bf16.msra.mxu0 %v1239
      %1265 = vmatpush.bf16.msra.mxu0 %v1238
      %1266 = vmatmul.bf16.gmra.mxu0 %v1247
      %v1267 = vpop.f32.mrf.mxu0
      %v1268 = vadd.f32 %v1203, %v1267
      %v1269 = vpop.f32.mrf.mxu0
      %v1270 = vadd.f32 %v1205, %v1269
      %1271 = vmatmul.bf16.gmra.mxu0 %v1250
      %v1272 = vpop.f32.mrf.mxu0
      %v1273 = vadd.f32 %v1208, %v1272
      %v1274 = vpop.f32.mrf.mxu0
      %v1275 = vadd.f32 %v1210, %v1274
      %1276 = vmatmul.bf16.gmra.mxu0 %v1253
      %v1277 = vpop.f32.mrf.mxu0
      %v1278 = vadd.f32 %v1213, %v1277
      %v1279 = vpop.f32.mrf.mxu0
      %v1280 = vadd.f32 %v1215, %v1279
      %1281 = vmatmul.bf16.gmra.mxu0 %v1256
      %v1282 = vpop.f32.mrf.mxu0
      %v1283 = vadd.f32 %v1218, %v1282
      %v1284 = vpop.f32.mrf.mxu0
      %v1285 = vadd.f32 %v1220, %v1284
      %1286 = vdwg.mxu0
      %v1287 = vld [vmem:[%s11] sm:$0x1]
      %v1289 = vperm.slane %v1287, 0
      %v1291 = vadd.f32 %v1268, %v1289
      %v1292 = vadd.f32 %v1270, %v1289
      %v1293 = vadd.f32 %v1273, %v1289
      %v1294 = vadd.f32 %v1275, %v1289
      %v1295 = vadd.f32 %v1278, %v1289
      %v1296 = vadd.f32 %v1280, %v1289
      %v1297 = vadd.f32 %v1283, %v1289
      %v1298 = vadd.f32 %v1285, %v1289
      %s1299 = scalar_lea.vmem %s9, 32
      %v1300 = vld [vmem:[%s1299] sm:$0xf]
      %v1301 = vld [vmem:[%s1299 + $0x4] sm:$0xf]
      %v1302 = vld [vmem:[%s1299 + $0x8] sm:$0xf]
      %v1303 = vld [vmem:[%s1299 + $0xc] sm:$0xf]
      %v1304 = vld [vmem:[%s1299 + $0x10] sm:$0xf]
      %v1305 = vld [vmem:[%s1299 + $0x14] sm:$0xf]
      %v1306 = vld [vmem:[%s1299 + $0x18] sm:$0xf]
      %v1307 = vld [vmem:[%s1299 + $0x1c] sm:$0xf]
      %s1308 = scalar_lea.vmem %s10, 16
      %v1309 = vld [vmem:[%s1308] sm:$0xf]
      %v1310 = vld [vmem:[%s1308 + $0x4] sm:$0xf]
      %v1311 = vld [vmem:[%s1308 + $0x8] sm:$0xf]
      %v1312 = vld [vmem:[%s1308 + $0xc] sm:$0xf]
      %v1317 = vunpack.c.l.b16 %v1309
      %v1318 = vunpack.c.l.b16 %v1310
      %v1319 = vunpack.c.l.b16 %v1311
      %v1320 = vunpack.c.l.b16 %v1312
      %v1321 = vpack.c.b16 %v1318, %v1317
      %v1322 = vpack.c.b16 %v1320, %v1319
      %1325 = vmatpush.bf16.msra.mxu0 0
      %1326 = vmatpush.bf16.msra.mxu0 0
      %1327 = vmatpush.bf16.msra.mxu0 0
      %1328 = vmatpush.bf16.msra.mxu0 0
      %1329 = vmatpush.bf16.msra.mxu0 0
      %1330 = vmatpush.bf16.msra.mxu0 0
      %1331 = vmatpush.bf16.msra.mxu0 %v1322
      %1332 = vmatpush.bf16.msra.mxu0 %v1321
      %1333 = vmatmul.bf16.gmra.mxu0 %v521
      %v1334 = vpop.f32.mrf.mxu0
      %v1335 = vadd.f32 0.0, %v1334
      %v1336 = vpop.f32.mrf.mxu0
      %v1337 = vadd.f32 0.0, %v1336
      %1338 = vmatmul.bf16.gmra.mxu0 %v524
      %v1339 = vpop.f32.mrf.mxu0
      %v1340 = vadd.f32 0.0, %v1339
      %v1341 = vpop.f32.mrf.mxu0
      %v1342 = vadd.f32 0.0, %v1341
      %1343 = vmatmul.bf16.gmra.mxu0 %v527
      %v1344 = vpop.f32.mrf.mxu0
      %v1345 = vadd.f32 0.0, %v1344
      %v1346 = vpop.f32.mrf.mxu0
      %v1347 = vadd.f32 0.0, %v1346
      %1348 = vmatmul.bf16.gmra.mxu0 %v530
      %v1349 = vpop.f32.mrf.mxu0
      %v1350 = vadd.f32 0.0, %v1349
      %v1351 = vpop.f32.mrf.mxu0
      %v1352 = vadd.f32 0.0, %v1351
      %1353 = vdwg.mxu0
      %v1362 = vunpack.c.l.b16 %v1300
      %v1363 = vunpack.c.l.b16 %v1301
      %v1364 = vunpack.c.l.b16 %v1302
      %v1365 = vunpack.c.l.b16 %v1303
      %v1366 = vunpack.c.l.b16 %v1304
      %v1367 = vunpack.c.l.b16 %v1305
      %v1368 = vunpack.c.l.b16 %v1306
      %v1369 = vunpack.c.l.b16 %v1307
      %v1370 = vpack.c.b16 %v1363, %v1362
      %v1371 = vpack.c.b16 %v1365, %v1364
      %v1372 = vpack.c.b16 %v1367, %v1366
      %v1373 = vpack.c.b16 %v1369, %v1368
      %1378 = vmatpush.bf16.msra.mxu0 0
      %1379 = vmatpush.bf16.msra.mxu0 0
      %1380 = vmatpush.bf16.msra.mxu0 0
      %1381 = vmatpush.bf16.msra.mxu0 0
      %1382 = vmatpush.bf16.msra.mxu0 %v1373
      %1383 = vmatpush.bf16.msra.mxu0 %v1372
      %1384 = vmatpush.bf16.msra.mxu0 %v1371
      %1385 = vmatpush.bf16.msra.mxu0 %v1370
      %1386 = vmatmul.bf16.gmra.mxu0 %v1247
      %v1387 = vpop.f32.mrf.mxu0
      %v1388 = vadd.f32 %v1335, %v1387
      %v1389 = vpop.f32.mrf.mxu0
      %v1390 = vadd.f32 %v1337, %v1389
      %1391 = vmatmul.bf16.gmra.mxu0 %v1250
      %v1392 = vpop.f32.mrf.mxu0
      %v1393 = vadd.f32 %v1340, %v1392
      %v1394 = vpop.f32.mrf.mxu0
      %v1395 = vadd.f32 %v1342, %v1394
      %1396 = vmatmul.bf16.gmra.mxu0 %v1253
      %v1397 = vpop.f32.mrf.mxu0
      %v1398 = vadd.f32 %v1345, %v1397
      %v1399 = vpop.f32.mrf.mxu0
      %v1400 = vadd.f32 %v1347, %v1399
      %1401 = vmatmul.bf16.gmra.mxu0 %v1256
      %v1402 = vpop.f32.mrf.mxu0
      %v1403 = vadd.f32 %v1350, %v1402
      %v1404 = vpop.f32.mrf.mxu0
      %v1405 = vadd.f32 %v1352, %v1404
      %1406 = vdwg.mxu0
      %s1407 = scalar_lea.vmem %s11, 1
      %v1408 = vld [vmem:[%s1407] sm:$0x1]
      %v1410 = vperm.slane %v1408, 0
      %v1412 = vadd.f32 %v1388, %v1410
      %v1413 = vadd.f32 %v1390, %v1410
      %v1414 = vadd.f32 %v1393, %v1410
      %v1415 = vadd.f32 %v1395, %v1410
      %v1416 = vadd.f32 %v1398, %v1410
      %v1417 = vadd.f32 %v1400, %v1410
      %v1418 = vadd.f32 %v1403, %v1410
      %v1419 = vadd.f32 %v1405, %v1410
      %s1420 = scalar_lea.vmem %s9, 64
      %v1421 = vld [vmem:[%s1420] sm:$0xf]
      %v1422 = vld [vmem:[%s1420 + $0x4] sm:$0xf]
      %v1423 = vld [vmem:[%s1420 + $0x8] sm:$0xf]
      %v1424 = vld [vmem:[%s1420 + $0xc] sm:$0xf]
      %v1425 = vld [vmem:[%s1420 + $0x10] sm:$0xf]
      %v1426 = vld [vmem:[%s1420 + $0x14] sm:$0xf]
      %v1427 = vld [vmem:[%s1420 + $0x18] sm:$0xf]
      %v1428 = vld [vmem:[%s1420 + $0x1c] sm:$0xf]
      %s1429 = scalar_lea.vmem %s10, 32
      %v1430 = vld [vmem:[%s1429] sm:$0xf]
      %v1431 = vld [vmem:[%s1429 + $0x4] sm:$0xf]
      %v1432 = vld [vmem:[%s1429 + $0x8] sm:$0xf]
      %v1433 = vld [vmem:[%s1429 + $0xc] sm:$0xf]
      %v1438 = vunpack.c.l.b16 %v1430
      %v1439 = vunpack.c.l.b16 %v1431
      %v1440 = vunpack.c.l.b16 %v1432
      %v1441 = vunpack.c.l.b16 %v1433
      %v1442 = vpack.c.b16 %v1439, %v1438
      %v1443 = vpack.c.b16 %v1441, %v1440
      %1446 = vmatpush.bf16.msra.mxu0 0
      %1447 = vmatpush.bf16.msra.mxu0 0
      %1448 = vmatpush.bf16.msra.mxu0 0
      %1449 = vmatpush.bf16.msra.mxu0 0
      %1450 = vmatpush.bf16.msra.mxu0 0
      %1451 = vmatpush.bf16.msra.mxu0 0
      %1452 = vmatpush.bf16.msra.mxu0 %v1443
      %1453 = vmatpush.bf16.msra.mxu0 %v1442
      %1454 = vmatmul.bf16.gmra.mxu0 %v521
      %v1455 = vpop.f32.mrf.mxu0
      %v1456 = vadd.f32 0.0, %v1455
      %v1457 = vpop.f32.mrf.mxu0
      %v1458 = vadd.f32 0.0, %v1457
      %1459 = vmatmul.bf16.gmra.mxu0 %v524
      %v1460 = vpop.f32.mrf.mxu0
      %v1461 = vadd.f32 0.0, %v1460
      %v1462 = vpop.f32.mrf.mxu0
      %v1463 = vadd.f32 0.0, %v1462
      %1464 = vmatmul.bf16.gmra.mxu0 %v527
      %v1465 = vpop.f32.mrf.mxu0
      %v1466 = vadd.f32 0.0, %v1465
      %v1467 = vpop.f32.mrf.mxu0
      %v1468 = vadd.f32 0.0, %v1467
      %1469 = vmatmul.bf16.gmra.mxu0 %v530
      %v1470 = vpop.f32.mrf.mxu0
      %v1471 = vadd.f32 0.0, %v1470
      %v1472 = vpop.f32.mrf.mxu0
      %v1473 = vadd.f32 0.0, %v1472
      %1474 = vdwg.mxu0
      %v1483 = vunpack.c.l.b16 %v1421
      %v1484 = vunpack.c.l.b16 %v1422
      %v1485 = vunpack.c.l.b16 %v1423
      %v1486 = vunpack.c.l.b16 %v1424
      %v1487 = vunpack.c.l.b16 %v1425
      %v1488 = vunpack.c.l.b16 %v1426
      %v1489 = vunpack.c.l.b16 %v1427
      %v1490 = vunpack.c.l.b16 %v1428
      %v1491 = vpack.c.b16 %v1484, %v1483
      %v1492 = vpack.c.b16 %v1486, %v1485
      %v1493 = vpack.c.b16 %v1488, %v1487
      %v1494 = vpack.c.b16 %v1490, %v1489
      %1499 = vmatpush.bf16.msra.mxu0 0
      %1500 = vmatpush.bf16.msra.mxu0 0
      %1501 = vmatpush.bf16.msra.mxu0 0
      %1502 = vmatpush.bf16.msra.mxu0 0
      %1503 = vmatpush.bf16.msra.mxu0 %v1494
      %1504 = vmatpush.bf16.msra.mxu0 %v1493
      %1505 = vmatpush.bf16.msra.mxu0 %v1492
      %1506 = vmatpush.bf16.msra.mxu0 %v1491
      %1507 = vmatmul.bf16.gmra.mxu0 %v1247
      %v1508 = vpop.f32.mrf.mxu0
      %v1509 = vadd.f32 %v1456, %v1508
      %v1510 = vpop.f32.mrf.mxu0
      %v1511 = vadd.f32 %v1458, %v1510
      %1512 = vmatmul.bf16.gmra.mxu0 %v1250
      %v1513 = vpop.f32.mrf.mxu0
      %v1514 = vadd.f32 %v1461, %v1513
      %v1515 = vpop.f32.mrf.mxu0
      %v1516 = vadd.f32 %v1463, %v1515
      %1517 = vmatmul.bf16.gmra.mxu0 %v1253
      %v1518 = vpop.f32.mrf.mxu0
      %v1519 = vadd.f32 %v1466, %v1518
      %v1520 = vpop.f32.mrf.mxu0
      %v1521 = vadd.f32 %v1468, %v1520
      %1522 = vmatmul.bf16.gmra.mxu0 %v1256
      %v1523 = vpop.f32.mrf.mxu0
      %v1524 = vadd.f32 %v1471, %v1523
      %v1525 = vpop.f32.mrf.mxu0
      %v1526 = vadd.f32 %v1473, %v1525
      %1527 = vdwg.mxu0
      %s1528 = scalar_lea.vmem %s11, 2
      %v1529 = vld [vmem:[%s1528] sm:$0x1]
      %v1531 = vperm.slane %v1529, 0
      %v1533 = vadd.f32 %v1509, %v1531
      %v1534 = vadd.f32 %v1511, %v1531
      %v1535 = vadd.f32 %v1514, %v1531
      %v1536 = vadd.f32 %v1516, %v1531
      %v1537 = vadd.f32 %v1519, %v1531
      %v1538 = vadd.f32 %v1521, %v1531
      %v1539 = vadd.f32 %v1524, %v1531
      %v1540 = vadd.f32 %v1526, %v1531
      %v1541 = vxor.u32 %v1533, 2147483648
      %v1542 = vxor.u32 %v1534, 2147483648
      %v1543 = vxor.u32 %v1535, 2147483648
      %v1544 = vxor.u32 %v1536, 2147483648
      %v1545 = vxor.u32 %v1537, 2147483648
      %v1546 = vxor.u32 %v1538, 2147483648
      %v1547 = vxor.u32 %v1539, 2147483648
      %v1548 = vxor.u32 %v1540, 2147483648
      %v1549 = vmul.f32 %v1541, 1.442695
      %v1550 = vpow.pop %v1549
      %v1551 = vmul.f32 %v1542, 1.442695
      %v1552 = vpow.pop %v1551
      %v1553 = vmul.f32 %v1543, 1.442695
      %v1554 = vpow.pop %v1553
      %v1555 = vmul.f32 %v1544, 1.442695
      %v1556 = vpow.pop %v1555
      %v1557 = vmul.f32 %v1545, 1.442695
      %v1558 = vpow.pop %v1557
      %v1559 = vmul.f32 %v1546, 1.442695
      %v1560 = vpow.pop %v1559
      %v1561 = vmul.f32 %v1547, 1.442695
      %v1562 = vpow.pop %v1561
      %v1563 = vmul.f32 %v1548, 1.442695
      %v1564 = vpow.pop %v1563
      %v1565 = vadd.f32 %v1550, 1.0
      %v1566 = vadd.f32 %v1552, 1.0
      %v1567 = vadd.f32 %v1554, 1.0
      %v1568 = vadd.f32 %v1556, 1.0
      %v1569 = vadd.f32 %v1558, 1.0
      %v1570 = vadd.f32 %v1560, 1.0
      %v1571 = vadd.f32 %v1562, 1.0
      %v1572 = vadd.f32 %v1564, 1.0
      %v1573 = vrcp.pop %v1565
      %v1574 = vmul.f32 %v1565, %v1573
      %v1575 = vsub.f32 1.0, %v1574
      %v1576 = vmul.f32 %v1573, %v1575
      %v1577 = vadd.f32 %v1573, %v1576
      %vm1578 = vweird.f32 %v1565
      %vm1579 = vweird.f32 %v1573
      %vm1580 = vmor %vm1578, %vm1579
      %v1581 = vsel %vm1580, %v1573, %v1577
      %v1582 = vand.u32 2147483647, %v1565
      %vm1583 = vcmp.eq.f32.partialorder %v1582, 8.507059e+37
      %v1584 = vand.u32 %v1565, 2147483648
      %v1585 = vor.u32 1.1754944e-38, %v1584
      %v1586 = vsel %vm1583, %v1585, %v1581
      %v1587 = vmul.f32 1.0, %v1586
      %v1588 = vrcp.pop %v1566
      %v1589 = vmul.f32 %v1566, %v1588
      %v1590 = vsub.f32 1.0, %v1589
      %v1591 = vmul.f32 %v1588, %v1590
      %v1592 = vadd.f32 %v1588, %v1591
      %vm1593 = vweird.f32 %v1566
      %vm1594 = vweird.f32 %v1588
      %vm1595 = vmor %vm1593, %vm1594
      %v1596 = vsel %vm1595, %v1588, %v1592
      %v1597 = vand.u32 2147483647, %v1566
      %vm1598 = vcmp.eq.f32.partialorder %v1597, 8.507059e+37
      %v1599 = vand.u32 %v1566, 2147483648
      %v1600 = vor.u32 1.1754944e-38, %v1599
      %v1601 = vsel %vm1598, %v1600, %v1596
      %v1602 = vmul.f32 1.0, %v1601
      %v1603 = vrcp.pop %v1567
      %v1604 = vmul.f32 %v1567, %v1603
      %v1605 = vsub.f32 1.0, %v1604
      %v1606 = vmul.f32 %v1603, %v1605
      %v1607 = vadd.f32 %v1603, %v1606
      %vm1608 = vweird.f32 %v1567
      %vm1609 = vweird.f32 %v1603
      %vm1610 = vmor %vm1608, %vm1609
      %v1611 = vsel %vm1610, %v1603, %v1607
      %v1612 = vand.u32 2147483647, %v1567
      %vm1613 = vcmp.eq.f32.partialorder %v1612, 8.507059e+37
      %v1614 = vand.u32 %v1567, 2147483648
      %v1615 = vor.u32 1.1754944e-38, %v1614
      %v1616 = vsel %vm1613, %v1615, %v1611
      %v1617 = vmul.f32 1.0, %v1616
      %v1618 = vrcp.pop %v1568
      %v1619 = vmul.f32 %v1568, %v1618
      %v1620 = vsub.f32 1.0, %v1619
      %v1621 = vmul.f32 %v1618, %v1620
      %v1622 = vadd.f32 %v1618, %v1621
      %vm1623 = vweird.f32 %v1568
      %vm1624 = vweird.f32 %v1618
      %vm1625 = vmor %vm1623, %vm1624
      %v1626 = vsel %vm1625, %v1618, %v1622
      %v1627 = vand.u32 2147483647, %v1568
      %vm1628 = vcmp.eq.f32.partialorder %v1627, 8.507059e+37
      %v1629 = vand.u32 %v1568, 2147483648
      %v1630 = vor.u32 1.1754944e-38, %v1629
      %v1631 = vsel %vm1628, %v1630, %v1626
      %v1632 = vmul.f32 1.0, %v1631
      %v1633 = vrcp.pop %v1569
      %v1634 = vmul.f32 %v1569, %v1633
      %v1635 = vsub.f32 1.0, %v1634
      %v1636 = vmul.f32 %v1633, %v1635
      %v1637 = vadd.f32 %v1633, %v1636
      %vm1638 = vweird.f32 %v1569
      %vm1639 = vweird.f32 %v1633
      %vm1640 = vmor %vm1638, %vm1639
      %v1641 = vsel %vm1640, %v1633, %v1637
      %v1642 = vand.u32 2147483647, %v1569
      %vm1643 = vcmp.eq.f32.partialorder %v1642, 8.507059e+37
      %v1644 = vand.u32 %v1569, 2147483648
      %v1645 = vor.u32 1.1754944e-38, %v1644
      %v1646 = vsel %vm1643, %v1645, %v1641
      %v1647 = vmul.f32 1.0, %v1646
      %v1648 = vrcp.pop %v1570
      %v1649 = vmul.f32 %v1570, %v1648
      %v1650 = vsub.f32 1.0, %v1649
      %v1651 = vmul.f32 %v1648, %v1650
      %v1652 = vadd.f32 %v1648, %v1651
      %vm1653 = vweird.f32 %v1570
      %vm1654 = vweird.f32 %v1648
      %vm1655 = vmor %vm1653, %vm1654
      %v1656 = vsel %vm1655, %v1648, %v1652
      %v1657 = vand.u32 2147483647, %v1570
      %vm1658 = vcmp.eq.f32.partialorder %v1657, 8.507059e+37
      %v1659 = vand.u32 %v1570, 2147483648
      %v1660 = vor.u32 1.1754944e-38, %v1659
      %v1661 = vsel %vm1658, %v1660, %v1656
      %v1662 = vmul.f32 1.0, %v1661
      %v1663 = vrcp.pop %v1571
      %v1664 = vmul.f32 %v1571, %v1663
      %v1665 = vsub.f32 1.0, %v1664
      %v1666 = vmul.f32 %v1663, %v1665
      %v1667 = vadd.f32 %v1663, %v1666
      %vm1668 = vweird.f32 %v1571
      %vm1669 = vweird.f32 %v1663
      %vm1670 = vmor %vm1668, %vm1669
      %v1671 = vsel %vm1670, %v1663, %v1667
      %v1672 = vand.u32 2147483647, %v1571
      %vm1673 = vcmp.eq.f32.partialorder %v1672, 8.507059e+37
      %v1674 = vand.u32 %v1571, 2147483648
      %v1675 = vor.u32 1.1754944e-38, %v1674
      %v1676 = vsel %vm1673, %v1675, %v1671
      %v1677 = vmul.f32 1.0, %v1676
      %v1678 = vrcp.pop %v1572
      %v1679 = vmul.f32 %v1572, %v1678
      %v1680 = vsub.f32 1.0, %v1679
      %v1681 = vmul.f32 %v1678, %v1680
      %v1682 = vadd.f32 %v1678, %v1681
      %vm1683 = vweird.f32 %v1572
      %vm1684 = vweird.f32 %v1678
      %vm1685 = vmor %vm1683, %vm1684
      %v1686 = vsel %vm1685, %v1678, %v1682
      %v1687 = vand.u32 2147483647, %v1572
      %vm1688 = vcmp.eq.f32.partialorder %v1687, 8.507059e+37
      %v1689 = vand.u32 %v1572, 2147483648
      %v1690 = vor.u32 1.1754944e-38, %v1689
      %v1691 = vsel %vm1688, %v1690, %v1686
      %v1692 = vmul.f32 1.0, %v1691
      %v1693 = vsub.f32 1.0, %v1587
      %v1694 = vsub.f32 1.0, %v1602
      %v1695 = vsub.f32 1.0, %v1617
      %v1696 = vsub.f32 1.0, %v1632
      %v1697 = vsub.f32 1.0, %v1647
      %v1698 = vsub.f32 1.0, %v1662
      %v1699 = vsub.f32 1.0, %v1677
      %v1700 = vsub.f32 1.0, %v1692
      %v1701 = vmul.f32 %v1693, %v483
      %v1702 = vmul.f32 %v1694, %v484
      %v1703 = vmul.f32 %v1695, %v485
      %v1704 = vmul.f32 %v1696, %v486
      %v1705 = vmul.f32 %v1697, %v487
      %v1706 = vmul.f32 %v1698, %v488
      %v1707 = vmul.f32 %v1699, %v489
      %v1708 = vmul.f32 %v1700, %v490
      %v1709 = vtanh.pop %v1412
      %v1710 = vtanh.pop %v1413
      %v1711 = vtanh.pop %v1414
      %v1712 = vtanh.pop %v1415
      %v1713 = vtanh.pop %v1416
      %v1714 = vtanh.pop %v1417
      %v1715 = vtanh.pop %v1418
      %v1716 = vtanh.pop %v1419
      %v1717 = vmul.f32 %v1587, %v1709
      %v1718 = vmul.f32 %v1602, %v1710
      %v1719 = vmul.f32 %v1617, %v1711
      %v1720 = vmul.f32 %v1632, %v1712
      %v1721 = vmul.f32 %v1647, %v1713
      %v1722 = vmul.f32 %v1662, %v1714
      %v1723 = vmul.f32 %v1677, %v1715
      %v1724 = vmul.f32 %v1692, %v1716
      %v1725 = vadd.f32 %v1701, %v1717
      %v1726 = vadd.f32 %v1702, %v1718
      %v1727 = vadd.f32 %v1703, %v1719
      %v1728 = vadd.f32 %v1704, %v1720
      %v1729 = vadd.f32 %v1705, %v1721
      %v1730 = vadd.f32 %v1706, %v1722
      %v1731 = vadd.f32 %v1707, %v1723
      %v1732 = vadd.f32 %v1708, %v1724
      %v1733 = vxor.u32 %v1291, 2147483648
      %v1734 = vxor.u32 %v1292, 2147483648
      %v1735 = vxor.u32 %v1293, 2147483648
      %v1736 = vxor.u32 %v1294, 2147483648
      %v1737 = vxor.u32 %v1295, 2147483648
      %v1738 = vxor.u32 %v1296, 2147483648
      %v1739 = vxor.u32 %v1297, 2147483648
      %v1740 = vxor.u32 %v1298, 2147483648
      %v1741 = vmul.f32 %v1733, 1.442695
      %v1742 = vpow.pop %v1741
      %v1743 = vmul.f32 %v1734, 1.442695
      %v1744 = vpow.pop %v1743
      %v1745 = vmul.f32 %v1735, 1.442695
      %v1746 = vpow.pop %v1745
      %v1747 = vmul.f32 %v1736, 1.442695
      %v1748 = vpow.pop %v1747
      %v1749 = vmul.f32 %v1737, 1.442695
      %v1750 = vpow.pop %v1749
      %v1751 = vmul.f32 %v1738, 1.442695
      %v1752 = vpow.pop %v1751
      %v1753 = vmul.f32 %v1739, 1.442695
      %v1754 = vpow.pop %v1753
      %v1755 = vmul.f32 %v1740, 1.442695
      %v1756 = vpow.pop %v1755
      %v1757 = vadd.f32 %v1742, 1.0
      %v1758 = vadd.f32 %v1744, 1.0
      %v1759 = vadd.f32 %v1746, 1.0
      %v1760 = vadd.f32 %v1748, 1.0
      %v1761 = vadd.f32 %v1750, 1.0
      %v1762 = vadd.f32 %v1752, 1.0
      %v1763 = vadd.f32 %v1754, 1.0
      %v1764 = vadd.f32 %v1756, 1.0
      %v1765 = vrcp.pop %v1757
      %v1766 = vmul.f32 %v1757, %v1765
      %v1767 = vsub.f32 1.0, %v1766
      %v1768 = vmul.f32 %v1765, %v1767
      %v1769 = vadd.f32 %v1765, %v1768
      %vm1770 = vweird.f32 %v1757
      %vm1771 = vweird.f32 %v1765
      %vm1772 = vmor %vm1770, %vm1771
      %v1773 = vsel %vm1772, %v1765, %v1769
      %v1774 = vand.u32 2147483647, %v1757
      %vm1775 = vcmp.eq.f32.partialorder %v1774, 8.507059e+37
      %v1776 = vand.u32 %v1757, 2147483648
      %v1777 = vor.u32 1.1754944e-38, %v1776
      %v1778 = vsel %vm1775, %v1777, %v1773
      %v1779 = vmul.f32 1.0, %v1778
      %v1780 = vrcp.pop %v1758
      %v1781 = vmul.f32 %v1758, %v1780
      %v1782 = vsub.f32 1.0, %v1781
      %v1783 = vmul.f32 %v1780, %v1782
      %v1784 = vadd.f32 %v1780, %v1783
      %vm1785 = vweird.f32 %v1758
      %vm1786 = vweird.f32 %v1780
      %vm1787 = vmor %vm1785, %vm1786
      %v1788 = vsel %vm1787, %v1780, %v1784
      %v1789 = vand.u32 2147483647, %v1758
      %vm1790 = vcmp.eq.f32.partialorder %v1789, 8.507059e+37
      %v1791 = vand.u32 %v1758, 2147483648
      %v1792 = vor.u32 1.1754944e-38, %v1791
      %v1793 = vsel %vm1790, %v1792, %v1788
      %v1794 = vmul.f32 1.0, %v1793
      %v1795 = vrcp.pop %v1759
      %v1796 = vmul.f32 %v1759, %v1795
      %v1797 = vsub.f32 1.0, %v1796
      %v1798 = vmul.f32 %v1795, %v1797
      %v1799 = vadd.f32 %v1795, %v1798
      %vm1800 = vweird.f32 %v1759
      %vm1801 = vweird.f32 %v1795
      %vm1802 = vmor %vm1800, %vm1801
      %v1803 = vsel %vm1802, %v1795, %v1799
      %v1804 = vand.u32 2147483647, %v1759
      %vm1805 = vcmp.eq.f32.partialorder %v1804, 8.507059e+37
      %v1806 = vand.u32 %v1759, 2147483648
      %v1807 = vor.u32 1.1754944e-38, %v1806
      %v1808 = vsel %vm1805, %v1807, %v1803
      %v1809 = vmul.f32 1.0, %v1808
      %v1810 = vrcp.pop %v1760
      %v1811 = vmul.f32 %v1760, %v1810
      %v1812 = vsub.f32 1.0, %v1811
      %v1813 = vmul.f32 %v1810, %v1812
      %v1814 = vadd.f32 %v1810, %v1813
      %vm1815 = vweird.f32 %v1760
      %vm1816 = vweird.f32 %v1810
      %vm1817 = vmor %vm1815, %vm1816
      %v1818 = vsel %vm1817, %v1810, %v1814
      %v1819 = vand.u32 2147483647, %v1760
      %vm1820 = vcmp.eq.f32.partialorder %v1819, 8.507059e+37
      %v1821 = vand.u32 %v1760, 2147483648
      %v1822 = vor.u32 1.1754944e-38, %v1821
      %v1823 = vsel %vm1820, %v1822, %v1818
      %v1824 = vmul.f32 1.0, %v1823
      %v1825 = vrcp.pop %v1761
      %v1826 = vmul.f32 %v1761, %v1825
      %v1827 = vsub.f32 1.0, %v1826
      %v1828 = vmul.f32 %v1825, %v1827
      %v1829 = vadd.f32 %v1825, %v1828
      %vm1830 = vweird.f32 %v1761
      %vm1831 = vweird.f32 %v1825
      %vm1832 = vmor %vm1830, %vm1831
      %v1833 = vsel %vm1832, %v1825, %v1829
      %v1834 = vand.u32 2147483647, %v1761
      %vm1835 = vcmp.eq.f32.partialorder %v1834, 8.507059e+37
      %v1836 = vand.u32 %v1761, 2147483648
      %v1837 = vor.u32 1.1754944e-38, %v1836
      %v1838 = vsel %vm1835, %v1837, %v1833
      %v1839 = vmul.f32 1.0, %v1838
      %v1840 = vrcp.pop %v1762
      %v1841 = vmul.f32 %v1762, %v1840
      %v1842 = vsub.f32 1.0, %v1841
      %v1843 = vmul.f32 %v1840, %v1842
      %v1844 = vadd.f32 %v1840, %v1843
      %vm1845 = vweird.f32 %v1762
      %vm1846 = vweird.f32 %v1840
      %vm1847 = vmor %vm1845, %vm1846
      %v1848 = vsel %vm1847, %v1840, %v1844
      %v1849 = vand.u32 2147483647, %v1762
      %vm1850 = vcmp.eq.f32.partialorder %v1849, 8.507059e+37
      %v1851 = vand.u32 %v1762, 2147483648
      %v1852 = vor.u32 1.1754944e-38, %v1851
      %v1853 = vsel %vm1850, %v1852, %v1848
      %v1854 = vmul.f32 1.0, %v1853
      %v1855 = vrcp.pop %v1763
      %v1856 = vmul.f32 %v1763, %v1855
      %v1857 = vsub.f32 1.0, %v1856
      %v1858 = vmul.f32 %v1855, %v1857
      %v1859 = vadd.f32 %v1855, %v1858
      %vm1860 = vweird.f32 %v1763
      %vm1861 = vweird.f32 %v1855
      %vm1862 = vmor %vm1860, %vm1861
      %v1863 = vsel %vm1862, %v1855, %v1859
      %v1864 = vand.u32 2147483647, %v1763
      %vm1865 = vcmp.eq.f32.partialorder %v1864, 8.507059e+37
      %v1866 = vand.u32 %v1763, 2147483648
      %v1867 = vor.u32 1.1754944e-38, %v1866
      %v1868 = vsel %vm1865, %v1867, %v1863
      %v1869 = vmul.f32 1.0, %v1868
      %v1870 = vrcp.pop %v1764
      %v1871 = vmul.f32 %v1764, %v1870
      %v1872 = vsub.f32 1.0, %v1871
      %v1873 = vmul.f32 %v1870, %v1872
      %v1874 = vadd.f32 %v1870, %v1873
      %vm1875 = vweird.f32 %v1764
      %vm1876 = vweird.f32 %v1870
      %vm1877 = vmor %vm1875, %vm1876
      %v1878 = vsel %vm1877, %v1870, %v1874
      %v1879 = vand.u32 2147483647, %v1764
      %vm1880 = vcmp.eq.f32.partialorder %v1879, 8.507059e+37
      %v1881 = vand.u32 %v1764, 2147483648
      %v1882 = vor.u32 1.1754944e-38, %v1881
      %v1883 = vsel %vm1880, %v1882, %v1878
      %v1884 = vmul.f32 1.0, %v1883
      %v1885 = vmul.f32 %v1779, %v1725
      %v1886 = vmul.f32 %v1794, %v1726
      %v1887 = vmul.f32 %v1809, %v1727
      %v1888 = vmul.f32 %v1824, %v1728
      %v1889 = vmul.f32 %v1839, %v1729
      %v1890 = vmul.f32 %v1854, %v1730
      %v1891 = vmul.f32 %v1869, %v1731
      %v1892 = vmul.f32 %v1884, %v1732
      %1893 = vst.msk [vmem:[%s468] sm:$0xff] %vm519, %v1885
      %1894 = vst.msk [vmem:[%s468 + $0x8] sm:$0xff] %vm519, %v1886
      %1895 = vst.msk [vmem:[%s468 + $0x10] sm:$0xff] %vm519, %v1887
      %1896 = vst.msk [vmem:[%s468 + $0x18] sm:$0xff] %vm519, %v1888
      %1897 = vst.msk [vmem:[%s468 + $0x20] sm:$0xff] %vm519, %v1889
      %1898 = vst.msk [vmem:[%s468 + $0x28] sm:$0xff] %vm519, %v1890
      %1899 = vst.msk [vmem:[%s468 + $0x30] sm:$0xff] %vm519, %v1891
      %1900 = vst.msk [vmem:[%s468 + $0x38] sm:$0xff] %vm519, %v1892
      %1901 = vst.msk [vmem:[%s473] sm:$0xff] %vm519, %v1725
      %1902 = vst.msk [vmem:[%s473 + $0x8] sm:$0xff] %vm519, %v1726
      %1903 = vst.msk [vmem:[%s473 + $0x10] sm:$0xff] %vm519, %v1727
      %1904 = vst.msk [vmem:[%s473 + $0x18] sm:$0xff] %vm519, %v1728
      %1905 = vst.msk [vmem:[%s473 + $0x20] sm:$0xff] %vm519, %v1729
      %1906 = vst.msk [vmem:[%s473 + $0x28] sm:$0xff] %vm519, %v1730
      %1907 = vst.msk [vmem:[%s473 + $0x30] sm:$0xff] %vm519, %v1731
      %1908 = vst.msk [vmem:[%s473 + $0x38] sm:$0xff] %vm519, %v1732
      %p1909 = scmp.lt.s32.totalorder %s25, 1
      %s1910 = scalar_select %p1909, %s25, 1
      %s1911 = smul.addr %s1910, 8
      %s1912 = smul.addr %s1911, 8
      %s1913 = scalar_lea.vmem %s12, %s1912
      %p1914 = scmp.lt.s32.totalorder %s25, 1
      %s1915 = scalar_select %p1914, %s25, 1
      %s1916 = smul.addr %s1915, 8
      %s1917 = smul.addr %s1916, 8
      %s1918 = scalar_lea.vmem %s13, %s1917
      // Predicated region
      $region69: #{tpu_custom_call.1} parent=67 // pred_check
        %p1919 = pneg %p305
      $region70: #{tpu_custom_call.1} parent=67 // pred_check_branch
        %1921 = sbr.rel (%p1919) target = $region72
      $region71: #{tpu_custom_call.1} parent=67 // pred_region
        _
      $region72: #{tpu_custom_call.1} parent=67 // pred_fallthru
        _
      // Predicated region
      $region73: #{tpu_custom_call.1} parent=67 // pred_check
        %p1922 = pneg %p331
      $region74: #{tpu_custom_call.1} parent=67 // pred_check_branch
        %1924 = sbr.rel (%p1922) target = $region76
      $region75: #{tpu_custom_call.1} parent=67 // pred_region
        _
      $region76: #{tpu_custom_call.1} parent=67 // pred_fallthru
        _
    $region68: #{tpu_custom_call.1} parent=5 // pred_fallthru
      _
    %p1925 = scmp.le.s32.totalorder 2, %s20
    // Predicated region
    $region77: #{tpu_custom_call.1} parent=5 // pred_check
      %p1926 = pneg %p1925
    $region78: #{tpu_custom_call.1} parent=5 // pred_check_branch
      %1928 = sbr.rel (%p1926) target = $region80
    $region79: #{tpu_custom_call.1} parent=5 // pred_region
      %s1929 = ssub.s32 %s20, 2
      // Predicated region
      $region81: #{tpu_custom_call.1} parent=79 // pred_check
        %p1930 = pneg %p311
      $region82: #{tpu_custom_call.1} parent=79 // pred_check_branch
        %1932 = sbr.rel (%p1930) target = $region84
      $region83: #{tpu_custom_call.1} parent=79 // pred_region
        %p1933 = scmp.lt.s32.totalorder %s26, 1
        %s1934 = scalar_select %p1933, %s26, 1
        %s1935 = smul.addr %s1934, 8
        %s1936 = smul.addr %s1935, 8
        %s1937 = scalar_lea.vmem %s12, %s1936
      $region84: #{tpu_custom_call.1} parent=79 // pred_fallthru
        _
      // Predicated region
      $region85: #{tpu_custom_call.1} parent=79 // pred_check
        %p1938 = pneg %p337
      $region86: #{tpu_custom_call.1} parent=79 // pred_check_branch
        %1940 = sbr.rel (%p1938) target = $region88
      $region87: #{tpu_custom_call.1} parent=79 // pred_region
        %p1941 = scmp.lt.s32.totalorder %s26, 1
        %s1942 = scalar_select %p1941, %s26, 1
        %s1943 = smul.addr %s1942, 8
        %s1944 = smul.addr %s1943, 8
        %s1945 = scalar_lea.vmem %s13, %s1944
      $region88: #{tpu_custom_call.1} parent=79 // pred_fallthru
        _
    $region80: #{tpu_custom_call.1} parent=5 // pred_fallthru
      _
  $region6: #{tpu_custom_call.1} parent=0 // loop_footer
    %s24 = sadd.s32 1, %s20
  $region7: #{tpu_custom_call.1} parent=0 // loop_footer_branch
    %19 = sbr.rel target = $region3
  $region8: #{tpu_custom_call.1} parent=0 // loop_exit
    _

</llo_original>
